<compile_context>
chip_gen: v7x
topology: tpu7x:2x2x1
jax: 0.10.0
libtpu: 0.0.40
codegen_flags: <defaults>
</compile_context>

<pallas_src>
import jax
import jax.numpy as jnp
from jax.experimental import pallas as pl
from jax.experimental.pallas import tpu as pltpu


def _conv_in_relu_kernel(x_ref, w_ref, o_ref):
    # x_ref: (1, Cin, H, W)   unpadded NCHW input tile (one batch element)
    # w_ref: (Cout, 9*Cin)    conv weights, row order (dy, dx, cin)
    # o_ref: (1, Cout, H*W)   lane-dense output tile
    _, Cin, H, W = x_ref.shape
    Cout = o_ref.shape[1]
    HW = H * W

    x = x_ref[0]  # (Cin, H, W)

    # Build the 1-pixel zero halo in VMEM (the conv's padding=1).
    zc = jnp.zeros((Cin, H, 1), x.dtype)
    xp = jnp.concatenate([zc, x, zc], axis=2)            # (Cin, H, W+2)
    zr = jnp.zeros((Cin, 1, W + 2), x.dtype)
    xp = jnp.concatenate([zr, xp, zr], axis=1)           # (Cin, H+2, W+2)

    # im2col: rows ordered (dy*3 + dx)*Cin + cin  -> (9*Cin, H*W).
    cols = []
    for dy in range(3):
        for dx in range(3):
            cols.append(xp[:, dy:dy + H, dx:dx + W].reshape(Cin, HW))
    patches = jnp.concatenate(cols, axis=0)              # (9*Cin, H*W)

    # bf16 MXU inputs only once the contraction dim is large enough to matter
    # (keeps exact f32 numerics at these small channel counts).
    mm_dtype = jnp.bfloat16 if (9 * Cin) >= 128 else jnp.float32

    # Single MXU contraction, K = 9*Cin, lane-dense (Cout, H*W) accumulator.
    acc = jnp.dot(
        w_ref[...].astype(mm_dtype),
        patches.astype(mm_dtype),
        preferred_element_type=jnp.float32,
    )                                                    # (Cout, H*W) f32

    # InstanceNorm2d (affine=False, eps=1e-5, biased variance), one-pass
    # stats over the lane (spatial) axis.  Conv bias is omitted: a constant
    # per-channel bias cancels exactly under the mean subtraction.
    inv_hw = 1.0 / HW
    s1 = jnp.sum(acc, axis=1, keepdims=True)
    s2 = jnp.sum(acc * acc, axis=1, keepdims=True)
    mean = s1 * inv_hw
    var = s2 * inv_hw - mean * mean
    y = (acc - mean) * jax.lax.rsqrt(var + 1e-5)

    # ReLU
    y = jnp.maximum(y, 0.0)

    # TODO(synk): Dropout2d is identity in eval/inference mode; training-mode
    # per-channel dropout with 1/(1-p) scaling is intentionally omitted.

    o_ref[...] = y[None].astype(o_ref.dtype)


def conv_block_2x_to_x(x_nchw, weight_oihw, bias=None, drop_prob=0.0):
    """Forward pass of ConvBlock2X_to_X. Input/Output are NCHW (PyTorch)."""
    # Bias cancels exactly under InstanceNorm(affine=False); dropout is
    # identity at inference.
    del bias, drop_prob
    N, Cin, H, W = x_nchw.shape
    Cout = weight_oihw.shape[0]

    # OIHW -> (Cout, 9*Cin) with row order (dy, dx, cin); tiny weight reorder.
    w_r = jnp.transpose(weight_oihw, (0, 2, 3, 1)).reshape(Cout, 9 * Cin)

    out = pl.pallas_call(
        _conv_in_relu_kernel,
        out_shape=jax.ShapeDtypeStruct((N, Cout, H * W), x_nchw.dtype),
        grid_spec=pltpu.PrefetchScalarGridSpec(
            num_scalar_prefetch=0,
            grid=(N,),
            in_specs=[
                pl.BlockSpec((1, Cin, H, W), lambda n: (n, 0, 0, 0)),
                pl.BlockSpec((Cout, 9 * Cin), lambda n: (0, 0)),
            ],
            out_specs=pl.BlockSpec((1, Cout, H * W), lambda n: (n, 0, 0)),
        ),
        compiler_params=pltpu.CompilerParams(
            dimension_semantics=("parallel",)),
    )(x_nchw, w_r)

    # Free reshape (trailing-dim split) back to NCHW.
    return out.reshape(N, Cout, H, W)


if __name__ == "__main__":
    # Small shapes consistent with the module: N=2, in_chans=4, out_chans=8,
    # spatial 16x16, drop_prob=0.1 (identity at inference).
    N, in_chans, out_chans, H, W = 2, 4, 8, 16, 16
    drop_prob = 0.1

    key = jax.random.PRNGKey(0)
    kx, kw, kb = jax.random.split(key, 3)

    x = jax.random.normal(kx, (N, in_chans, H, W), dtype=jnp.float32)

    # Deterministic Kaiming-uniform-like init (matches nn.Conv2d shapes).
    fan_in = in_chans * 3 * 3
    bound = 1.0 / jnp.sqrt(fan_in)
    weight = jax.random.uniform(
        kw, (out_chans, in_chans, 3, 3), minval=-bound, maxval=bound,
        dtype=jnp.float32)
    bias = jax.random.uniform(
        kb, (out_chans,), minval=-bound, maxval=bound, dtype=jnp.float32)

    out = conv_block_2x_to_x(x, weight, bias, drop_prob)
    jax.block_until_ready(out)
    assert out.shape == (N, out_chans, H, W)
    print("KERNEL_OK")
</pallas_src>

<mosaic_0001>
module attributes {stable_mosaic.version = 11 : i64} {
  func.func @_conv_in_relu_kernel(%arg0: i32, %arg1: memref<1x4x16x16xf32, #tpu.memory_space<vmem>>, %arg2: memref<8x36xf32, #tpu.memory_space<vmem>>, %arg3: memref<1x8x256xf32, #tpu.memory_space<vmem>>) attributes {dimension_semantics = [#tpu.dimension_semantics<parallel>], iteration_bounds = array<i64: 2>, scalar_prefetch = 0 : i64, scratch_operands = 0 : i64, tpu.core_type = #tpu.core_type<tc>, window_params = [{transform_indices = @transform_0, window_bounds = array<i64: 1, 4, 16, 16>}, {pipeline_mode = #tpu.pipeline_mode<synchronous>, transform_indices = @transform_1, window_bounds = array<i64: 8, 36>}, {transform_indices = @transform_2, window_bounds = array<i64: 1, 8, 256>}]} {
    %c0 = arith.constant 0 : index
    %c0_0 = arith.constant 0 : index
    %c0_1 = arith.constant 0 : index
    %c0_2 = arith.constant 0 : index
    %0 = vector.load %arg1[%c0, %c0_0, %c0_1, %c0_2] : memref<1x4x16x16xf32, #tpu.memory_space<vmem>>, vector<1x4x16x16xf32>
    %1 = vector.shape_cast %0 : vector<1x4x16x16xf32> to vector<4x16x16xf32>
    %cst = arith.constant 0.000000e+00 : f32
    %2 = vector.broadcast %cst : f32 to vector<4x16x1xf32>
    %3 = tpu.concatenate %2, %1, %2 in 2 : vector<4x16x1xf32>, vector<4x16x16xf32>, vector<4x16x1xf32> -> vector<4x16x18xf32>
    %cst_3 = arith.constant 0.000000e+00 : f32
    %4 = vector.broadcast %cst_3 : f32 to vector<4x1x18xf32>
    %5 = tpu.concatenate %4, %3, %4 in 1 : vector<4x1x18xf32>, vector<4x16x18xf32>, vector<4x1x18xf32> -> vector<4x18x18xf32>
    %6 = vector.extract_strided_slice %5 {offsets = [0, 0, 0], sizes = [4, 16, 16], strides = [1, 1, 1]} : vector<4x18x18xf32> to vector<4x16x16xf32>
    %7 = vector.shape_cast %6 : vector<4x16x16xf32> to vector<4x256xf32>
    %8 = vector.extract_strided_slice %5 {offsets = [0, 0, 1], sizes = [4, 16, 16], strides = [1, 1, 1]} : vector<4x18x18xf32> to vector<4x16x16xf32>
    %9 = vector.shape_cast %8 : vector<4x16x16xf32> to vector<4x256xf32>
    %10 = vector.extract_strided_slice %5 {offsets = [0, 0, 2], sizes = [4, 16, 16], strides = [1, 1, 1]} : vector<4x18x18xf32> to vector<4x16x16xf32>
    %11 = vector.shape_cast %10 : vector<4x16x16xf32> to vector<4x256xf32>
    %12 = vector.extract_strided_slice %5 {offsets = [0, 1, 0], sizes = [4, 16, 16], strides = [1, 1, 1]} : vector<4x18x18xf32> to vector<4x16x16xf32>
    %13 = vector.shape_cast %12 : vector<4x16x16xf32> to vector<4x256xf32>
    %14 = vector.extract_strided_slice %5 {offsets = [0, 1, 1], sizes = [4, 16, 16], strides = [1, 1, 1]} : vector<4x18x18xf32> to vector<4x16x16xf32>
    %15 = vector.shape_cast %14 : vector<4x16x16xf32> to vector<4x256xf32>
    %16 = vector.extract_strided_slice %5 {offsets = [0, 1, 2], sizes = [4, 16, 16], strides = [1, 1, 1]} : vector<4x18x18xf32> to vector<4x16x16xf32>
    %17 = vector.shape_cast %16 : vector<4x16x16xf32> to vector<4x256xf32>
    %18 = vector.extract_strided_slice %5 {offsets = [0, 2, 0], sizes = [4, 16, 16], strides = [1, 1, 1]} : vector<4x18x18xf32> to vector<4x16x16xf32>
    %19 = vector.shape_cast %18 : vector<4x16x16xf32> to vector<4x256xf32>
    %20 = vector.extract_strided_slice %5 {offsets = [0, 2, 1], sizes = [4, 16, 16], strides = [1, 1, 1]} : vector<4x18x18xf32> to vector<4x16x16xf32>
    %21 = vector.shape_cast %20 : vector<4x16x16xf32> to vector<4x256xf32>
    %22 = vector.extract_strided_slice %5 {offsets = [0, 2, 2], sizes = [4, 16, 16], strides = [1, 1, 1]} : vector<4x18x18xf32> to vector<4x16x16xf32>
    %23 = vector.shape_cast %22 : vector<4x16x16xf32> to vector<4x256xf32>
    %24 = tpu.concatenate %7, %9, %11, %13, %15, %17, %19, %21, %23 in 0 : vector<4x256xf32>, vector<4x256xf32>, vector<4x256xf32>, vector<4x256xf32>, vector<4x256xf32>, vector<4x256xf32>, vector<4x256xf32>, vector<4x256xf32>, vector<4x256xf32> -> vector<36x256xf32>
    %c0_4 = arith.constant 0 : index
    %c0_5 = arith.constant 0 : index
    %25 = vector.load %arg2[%c0_4, %c0_5] : memref<8x36xf32, #tpu.memory_space<vmem>>, vector<8x36xf32>
    %cst_6 = arith.constant dense<0.000000e+00> : vector<8x256xf32>
    %26 = tpu.matmul %25, %24, %cst_6 {dimension_numbers = #tpu.dot_dimension_numbers<[1], [0], [0], [1], [0, 0, 1, 1], [], []>} : vector<8x36xf32>, vector<36x256xf32>, vector<8x256xf32> -> vector<8x256xf32>
    %cst_7 = arith.constant dense<0.000000e+00> : vector<8xf32>
    %27 = vector.multi_reduction <add>, %26, %cst_7 [1] : vector<8x256xf32> to vector<8xf32>
    %28 = vector.shape_cast %27 : vector<8xf32> to vector<8x1xf32>
    %29 = arith.mulf %26, %26 : vector<8x256xf32>
    %cst_8 = arith.constant dense<0.000000e+00> : vector<8xf32>
    %30 = vector.multi_reduction <add>, %29, %cst_8 [1] : vector<8x256xf32> to vector<8xf32>
    %31 = vector.shape_cast %30 : vector<8xf32> to vector<8x1xf32>
    %cst_9 = arith.constant 3.906250e-03 : f32
    %32 = vector.broadcast %cst_9 : f32 to vector<8x1xf32>
    %33 = arith.mulf %28, %32 : vector<8x1xf32>
    %cst_10 = arith.constant 3.906250e-03 : f32
    %34 = vector.broadcast %cst_10 : f32 to vector<8x1xf32>
    %35 = arith.mulf %31, %34 : vector<8x1xf32>
    %36 = arith.mulf %33, %33 : vector<8x1xf32>
    %37 = arith.subf %35, %36 : vector<8x1xf32>
    %38 = vector.broadcast %33 : vector<8x1xf32> to vector<8x256xf32>
    %39 = arith.subf %26, %38 : vector<8x256xf32>
    %cst_11 = arith.constant 9.99999974E-6 : f32
    %40 = vector.broadcast %cst_11 : f32 to vector<8x1xf32>
    %41 = arith.addf %37, %40 : vector<8x1xf32>
    %42 = math.rsqrt %41 : vector<8x1xf32>
    %43 = vector.broadcast %42 : vector<8x1xf32> to vector<8x256xf32>
    %44 = arith.mulf %39, %43 : vector<8x256xf32>
    %cst_12 = arith.constant 0.000000e+00 : f32
    %45 = vector.broadcast %cst_12 : f32 to vector<8x256xf32>
    %46 = arith.maximumf %44, %45 : vector<8x256xf32>
    %47 = vector.shape_cast %46 : vector<8x256xf32> to vector<1x8x256xf32>
    %c0_13 = arith.constant 0 : index
    %c0_14 = arith.constant 0 : index
    %c0_15 = arith.constant 0 : index
    %48 = vector.load %arg3[%c0_13, %c0_14, %c0_15] : memref<1x8x256xf32, #tpu.memory_space<vmem>>, vector<1x8x256xf32>
    tpu.vector_store %arg3[%c0_13, %c0_14, %c0_15], %47 {strides = array<i32>} : memref<1x8x256xf32, #tpu.memory_space<vmem>>, vector<1x8x256xf32>,
    return
  }
  func.func @transform_0(%arg0: i32) -> (i32, i32, i32, i32) {
    %c0_i32 = arith.constant 0 : i32
    %c0_i32_0 = arith.constant 0 : i32
    %c0_i32_1 = arith.constant 0 : i32
    %c0_i32_2 = arith.constant 0 : i32
    return %arg0, %c0_i32, %c0_i32_0, %c0_i32_1 : i32, i32, i32, i32
  }
  func.func @transform_1(%arg0: i32) -> (i32, i32) {
    %c0_i32 = arith.constant 0 : i32
    %c0_i32_0 = arith.constant 0 : i32
    %c0_i32_1 = arith.constant 0 : i32
    return %c0_i32, %c0_i32_0 : i32, i32
  }
  func.func @transform_2(%arg0: i32) -> (i32, i32, i32) {
    %c0_i32 = arith.constant 0 : i32
    %c0_i32_0 = arith.constant 0 : i32
    %c0_i32_1 = arith.constant 0 : i32
    return %arg0, %c0_i32, %c0_i32_0 : i32, i32, i32
  }
}

</mosaic_0001>

<llo_original>
// kernel: tpu_custom_call.1
$region0: #{tpu_custom_call.1}
  #allocation0 [shape = 'u32[]', space=smem, size = 0x4, offset = 0x4, fixed_abs, tag = 'smem constant byte address 0x4 - core index']
  #allocation1 [shape = 'u32[144,128]{1,0:T(1,128)}', space=vmem, size = 0x12000, scoped, tag = 'internal scratch']
  %s0 = inlined_call_operand.hbm [shape: f32[2,4,16,16], index: 0, kind: input, shape index: {}]
  %s1 = inlined_call_operand.hbm [shape: f32[8,36], index: 1, kind: input, shape index: {}]
  %s2 = inlined_call_operand.hbm [shape: f32[2,8,256], index: 2, kind: output, shape index: {}]
  %s3 = sld [smem:[#allocation0]]
  $region49: #{tpu_custom_call.1} parent=0
    _
  %s5 = ssub.s32 1, %s3
  %s6 = scalar_select 0, %s5, %s3
  $region1: #{tpu_custom_call.1} parent=0
    #allocation2 [shape = 'u8[65536]{0}', space=vmem, size = 0x10000, scoped, tag = 'input window, operand 0']
    #allocation3 [shape = 's32[2]{0}', space=sflag, size = 0x8, scoped, tag = 'scoped memory for tpu_custom_call.1']
    #allocation4 [shape = 's32[2]{0}', space=sflag, size = 0x8, scoped, tag = 'scoped memory for tpu_custom_call.1']
    #allocation5 [shape = 'u8[4096]{0}', space=vmem, size = 0x1000, scoped, tag = 'input window, operand 1, single buffered']
    #allocation6 [shape = 's32[1]{0}', space=sflag, size = 0x4, scoped, tag = 'scoped memory for tpu_custom_call.1']
    #allocation7 [shape = 'u8[16384]{0}', space=vmem, size = 0x4000, scoped, tag = 'output window, operand 0']
    %7 = vsyncpa [#allocation3], 0
    %s8 = scalar_lea.sflag [#allocation3], 1
    %9 = vsyncpa %s8, 0
    %10 = vsyncpa [#allocation6], 0
    %11 = vsyncpa [#allocation4], 0
    %s12 = scalar_lea.sflag [#allocation4], 1
    %13 = vsyncpa %s12, 0
    loop: start=0, step=1, limit=4
    $region2: #{tpu_custom_call.1} parent=1 // loop_pre_header
      _
    $region3: #{tpu_custom_call.1} parent=1 // loop_header
      %s15 = sphi 0, %s19
      %p16 = scmp.ge.s32.totalorder %s15, 4
      %s25 = sphi 0, %s27
      %s28 = sphi 0, %s25
      %s29 = sphi 0, %s28
      %s45 = sphi 0, %s29
      %s49 = sphi 0, %s49
      %s51 = sphi 0, %s49
      %s52 = sphi 0, %s51
      %s66 = sphi 0, %s52
      %s72 = sphi 0, %s74
      %s75 = sphi 0, %s72
      %s76 = sphi 0, %s75
      %s92 = sphi 0, %s76
    $region4: #{tpu_custom_call.1} parent=1 // loop_header_branch
      %18 = sbr.rel (%p16) target = $region8
    $region5: #{tpu_custom_call.1} parent=1 // loop_body
      %s20 = ssub.s32 %s15, 1
      %s21 = ssub.s32 %s15, 2
      %s22 = sadd.s32 %s15, 1
      %s23 = ssub.s32 %s15, %s22
      %p24 = scmp.eq.s32.totalorder %s23, 0
      %s26 = sadd.s32 %s25, 1
      %s27 = scalar_select %p24, %s25, %s26
      %p30 = pneg %p24
      %p31 = scmp.eq.s32.totalorder %s15, 1
      %p32 = por %p30, %p31
      %p33 = scmp.ne.s32.totalorder %s25, %s28
      %p34 = scmp.eq.s32.totalorder %s15, 0
      %p35 = por %p33, %p34
      %p36 = scmp.ne.s32.totalorder %s25, %s28
      %p37 = scmp.eq.s32.totalorder %s20, 1
      %p38 = por %p36, %p37
      %p39 = scmp.ne.s32.totalorder %s28, %s29
      %p40 = scmp.eq.s32.totalorder %s20, 0
      %p41 = por %p39, %p40
      %p42 = scmp.ne.s32.totalorder %s28, %s29
      %p43 = scmp.eq.s32.totalorder %s21, 1
      %p44 = por %p42, %p43
      %p46 = scmp.ne.s32.totalorder %s29, %s45
      %p47 = scmp.eq.s32.totalorder %s21, 0
      %p48 = por %p46, %p47
      %s50 = sadd.s32 %s49, 1
      %p53 = scmp.eq.s32.totalorder %s15, 1
      %p54 = scmp.ne.s32.totalorder %s49, %s51
      %p55 = scmp.eq.s32.totalorder %s15, 0
      %p56 = por %p54, %p55
      %p57 = scmp.ne.s32.totalorder %s49, %s51
      %p58 = scmp.eq.s32.totalorder %s20, 1
      %p59 = por %p57, %p58
      %p60 = scmp.ne.s32.totalorder %s51, %s52
      %p61 = scmp.eq.s32.totalorder %s20, 0
      %p62 = por %p60, %p61
      %p63 = scmp.ne.s32.totalorder %s51, %s52
      %p64 = scmp.eq.s32.totalorder %s21, 1
      %p65 = por %p63, %p64
      %p67 = scmp.ne.s32.totalorder %s52, %s66
      %p68 = scmp.eq.s32.totalorder %s21, 0
      %p69 = por %p67, %p68
      %s70 = ssub.s32 %s15, %s22
      %p71 = scmp.eq.s32.totalorder %s70, 0
      %s73 = sadd.s32 %s72, 1
      %s74 = scalar_select %p71, %s72, %s73
      %p77 = pneg %p71
      %p78 = scmp.eq.s32.totalorder %s15, 1
      %p79 = por %p77, %p78
      %p80 = scmp.ne.s32.totalorder %s72, %s75
      %p81 = scmp.eq.s32.totalorder %s15, 0
      %p82 = por %p80, %p81
      %p83 = scmp.ne.s32.totalorder %s72, %s75
      %p84 = scmp.eq.s32.totalorder %s20, 1
      %p85 = por %p83, %p84
      %p86 = scmp.ne.s32.totalorder %s75, %s76
      %p87 = scmp.eq.s32.totalorder %s20, 0
      %p88 = por %p86, %p87
      %p89 = scmp.ne.s32.totalorder %s75, %s76
      %p90 = scmp.eq.s32.totalorder %s21, 1
      %p91 = por %p89, %p90
      %p93 = scmp.ne.s32.totalorder %s76, %s92
      %p94 = scmp.eq.s32.totalorder %s21, 0
      %p95 = por %p93, %p94
      %p96 = scmp.le.s32.totalorder 1, %s15
      %p97 = scmp.lt.s32.totalorder %s15, 3
      %p98 = pnand %p96, %p97
      %p99 = pneg %p98
      // Predicated region
      $region9: #{tpu_custom_call.1} parent=5 // pred_check
        _
      $region10: #{tpu_custom_call.1} parent=5 // pred_check_branch
        %101 = sbr.rel (%p98) target = $region12
      $region11: #{tpu_custom_call.1} parent=5 // pred_region
        %s102 = ssub.s32 %s15, 1
        // Predicated region
        $region13: #{tpu_custom_call.1} parent=11 // pred_check
          %p103 = pneg %p62
        $region14: #{tpu_custom_call.1} parent=11 // pred_check_branch
          %105 = sbr.rel (%p103) target = $region16
        $region15: #{tpu_custom_call.1} parent=11 // pred_region
          %s107 = ssub.s32 128, 128
          %108 = vsyncadd [#allocation6], %s107
          %s110 = sshll.u32 [#allocation5], 4
          %s111 = int_to_ptr.vmem [resolvable:$true] %s110
          %113 = dma.hbm_to_vmem [thread:$0]  %s1, 128, %s111, [#allocation6]
        $region16: #{tpu_custom_call.1} parent=11 // pred_fallthru
          _
      $region12: #{tpu_custom_call.1} parent=5 // pred_fallthru
        _
      %p114 = scmp.lt.s32.totalorder %s15, 2
      // Predicated region
      $region17: #{tpu_custom_call.1} parent=5 // pred_check
        %p115 = pneg %p114
      $region18: #{tpu_custom_call.1} parent=5 // pred_check_branch
        %117 = sbr.rel (%p115) target = $region20
      $region19: #{tpu_custom_call.1} parent=5 // pred_region
        // Predicated region
        $region21: #{tpu_custom_call.1} parent=19 // pred_check
          %p118 = pneg %p35
        $region22: #{tpu_custom_call.1} parent=19 // pred_check_branch
          %120 = sbr.rel (%p118) target = $region24
        $region23: #{tpu_custom_call.1} parent=19 // pred_region
          %s121 = sand.u32 %s25, 1
          %s122 = scalar_lea.sflag [#allocation3], %s121
          %s123 = sand.u32 %s25, 1
          %s124 = smul.addr %s123, 64
          %s125 = scalar_lea.vmem [#allocation2], %s124
          %s127 = ssub.s32 1024, 1024
          %128 = vsyncadd %s122, %s127
          %s129 = smul.addr %s15, 8
          %s130 = smul.addr %s129, 128
          %s131 = scalar_lea.hbm %s0, %s130
          %s132 = sshll.u32 %s125, 4
          %s133 = int_to_ptr.vmem [resolvable:$true] %s132
          %138 = dma.hbm_to_vmem [thread:$0]  %s131, 1024, %s133, %s122, 128, 128, 8
        $region24: #{tpu_custom_call.1} parent=19 // pred_fallthru
          _
      $region20: #{tpu_custom_call.1} parent=5 // pred_fallthru
        _
      %p139 = scmp.le.s32.totalorder 1, %s15
      %p140 = scmp.lt.s32.totalorder %s15, 3
      %p141 = pnand %p139, %p140
      %p142 = pneg %p141
      // Predicated region
      $region25: #{tpu_custom_call.1} parent=5 // pred_check
        _
      $region26: #{tpu_custom_call.1} parent=5 // pred_check_branch
        %144 = sbr.rel (%p141) target = $region28
      $region27: #{tpu_custom_call.1} parent=5 // pred_region
        %s145 = ssub.s32 %s15, 1
        %s146 = sand.u32 %s28, 1
        %s147 = scalar_lea.sflag [#allocation3], %s146
        %s148 = sand.u32 %s28, 1
        %s149 = smul.addr %s148, 64
        %s150 = scalar_lea.vmem [#allocation2], %s149
        // Predicated region
        $region29: #{tpu_custom_call.1} parent=27 // pred_check
          %p151 = pneg %p41
        $region30: #{tpu_custom_call.1} parent=27 // pred_check_branch
          %153 = sbr.rel (%p151) target = $region32
        $region31: #{tpu_custom_call.1} parent=27 // pred_region
          %154 = dma.done %s147, 1024
        $region32: #{tpu_custom_call.1} parent=27 // pred_fallthru
          _
        // Predicated region
        $region33: #{tpu_custom_call.1} parent=27 // pred_check
          %p155 = pneg %p62
        $region34: #{tpu_custom_call.1} parent=27 // pred_check_branch
          %157 = sbr.rel (%p155) target = $region36
        $region35: #{tpu_custom_call.1} parent=27 // pred_region
          %158 = dma.done [#allocation6], 128
        $region36: #{tpu_custom_call.1} parent=27 // pred_fallthru
          _
        %s159 = sand.u32 %s28, 1
        %s160 = scalar_lea.sflag [#allocation3], %s159
        %s161 = sand.u32 %s28, 1
        %s162 = smul.addr %s161, 64
        %s163 = scalar_lea.vmem [#allocation2], %s162
        %p164 = pneg %p41
        %p165 = pneg %p38
        %p166 = pneg %p62
        %p167 = pneg %p59
        %p168 = pneg %p88
        %p169 = pneg %p85
        %s170 = sand.u32 %s75, 1
        %s171 = scalar_lea.sflag [#allocation4], %s170
        %s172 = sand.u32 %s75, 1
        %s173 = smul.addr %s172, 16
        %s174 = scalar_lea.vmem [#allocation7], %s173
        %v175 = vld [vmem:[%s150] sm:$0xff]
        %v176 = vld [vmem:[%s150 + $0x8] sm:$0xff]
        %v177 = vld [vmem:[%s150 + $0x10] sm:$0xff]
        %v178 = vld [vmem:[%s150 + $0x18] sm:$0xff]
        %v179 = vld [vmem:[%s150 + $0x20] sm:$0xff]
        %v180 = vld [vmem:[%s150 + $0x28] sm:$0xff]
        %v181 = vld [vmem:[%s150 + $0x30] sm:$0xff]
        %v182 = vld [vmem:[%s150 + $0x38] sm:$0xff]
        %191 = vrot.lane.b32.xlu0 %v175, 1
        %v192 = vpop.permute.xlu0 %191
        %193 = vrot.lane.b32.xlu0 %v176, 1
        %v194 = vpop.permute.xlu0 %193
        %195 = vrot.lane.b32.xlu0 %v177, 1
        %v196 = vpop.permute.xlu0 %195
        %197 = vrot.lane.b32.xlu0 %v178, 1
        %v198 = vpop.permute.xlu0 %197
        %199 = vrot.lane.b32.xlu0 %v179, 1
        %v200 = vpop.permute.xlu0 %199
        %201 = vrot.lane.b32.xlu0 %v180, 1
        %v202 = vpop.permute.xlu0 %201
        %203 = vrot.lane.b32.xlu0 %v181, 1
        %v204 = vpop.permute.xlu0 %203
        %205 = vrot.lane.b32.xlu0 %v182, 1
        %v206 = vpop.permute.xlu0 %205
        %vm215 = vcmask 7168
        %v216 = vsel %vm215, 0.0, %v192
        %v217 = vsel %vm215, 0.0, %v194
        %v218 = vsel %vm215, 0.0, %v196
        %v219 = vsel %vm215, 0.0, %v198
        %v220 = vsel %vm215, 0.0, %v200
        %v221 = vsel %vm215, 0.0, %v202
        %v222 = vsel %vm215, 0.0, %v204
        %v223 = vsel %vm215, 0.0, %v206
        %vm224 = vcmask 138240
        %v225 = vsel %vm224, %v216, 0.0
        %v226 = vsel %vm224, %v217, 0.0
        %v227 = vsel %vm224, %v218, 0.0
        %v228 = vsel %vm224, %v219, 0.0
        %v229 = vsel %vm224, %v220, 0.0
        %v230 = vsel %vm224, %v221, 0.0
        %v231 = vsel %vm224, %v222, 0.0
        %v232 = vsel %vm224, %v223, 0.0
        %vm241 = vcmask 1040384
        %v242 = vrot.slane %v225, 7
        %v243 = vrot.slane %v226, 7
        %v244 = vsel %vm241, %v242, %v243
        %v245 = vrot.slane %v227, 7
        %v246 = vrot.slane %v228, 7
        %v247 = vsel %vm241, %v245, %v246
        %v248 = vrot.slane %v229, 7
        %v249 = vrot.slane %v230, 7
        %v250 = vsel %vm241, %v248, %v249
        %v251 = vrot.slane %v231, 7
        %v252 = vrot.slane %v232, 7
        %v253 = vsel %vm241, %v251, %v252
        %v266 = vsel %vm241, 0.0, %v242
        %v267 = vsel %vm241, 0.0, %v245
        %v268 = vsel %vm241, 0.0, %v248
        %v269 = vsel %vm241, 0.0, %v251
        %v270 = vsel %vm241, %v243, 0.0
        %v271 = vsel %vm241, %v246, 0.0
        %v272 = vsel %vm241, %v249, 0.0
        %v273 = vsel %vm241, %v252, 0.0
        %v274 = vcombine.low %v266, %v268
        %v275 = vcombine.high %v266, %v268
        %v277 = vunpack.c.l.s4 1983009808
        %v278 = vunpack.c.0.s8 %v277
        %v279 = vlaneseq
        %v280 = vshrl.u32 %v279, 7
        %v281 = vsub.s32 %v278, %v280
        %v282 = vrot.slane %v274, %v281
        %v284 = vunpack.c.l.s4 1983009808
        %v285 = vunpack.c.0.s8 %v284
        %v286 = vlaneseq
        %v287 = vshrl.u32 %v286, 7
        %v288 = vsub.s32 %v285, %v287
        %v289 = vrot.slane %v275, %v288
        %v290 = vcombine.low %v267, %v269
        %v291 = vcombine.high %v267, %v269
        %v293 = vunpack.c.l.s4 1983009808
        %v294 = vunpack.c.0.s8 %v293
        %v295 = vlaneseq
        %v296 = vshrl.u32 %v295, 7
        %v297 = vsub.s32 %v294, %v296
        %v298 = vrot.slane %v290, %v297
        %v300 = vunpack.c.l.s4 1983009808
        %v301 = vunpack.c.0.s8 %v300
        %v302 = vlaneseq
        %v303 = vshrl.u32 %v302, 7
        %v304 = vsub.s32 %v301, %v303
        %v305 = vrot.slane %v291, %v304
        %v306 = vcombine.low %v282, %v298
        %v307 = vcombine.high %v282, %v298
        %v309 = vunpack.c.l.s4 1934713408
        %v310 = vunpack.c.0.s8 %v309
        %v311 = vlaneseq
        %v312 = vshrl.u32 %v311, 7
        %v313 = vsub.s32 %v310, %v312
        %v314 = vrot.slane %v306, %v313
        %v316 = vunpack.c.l.s4 1934713408
        %v317 = vunpack.c.0.s8 %v316
        %v318 = vlaneseq
        %v319 = vshrl.u32 %v318, 7
        %v320 = vsub.s32 %v317, %v319
        %v321 = vrot.slane %v307, %v320
        %v322 = vcombine.low %v289, %v305
        %v323 = vcombine.high %v289, %v305
        %v325 = vunpack.c.l.s4 1934713408
        %v326 = vunpack.c.0.s8 %v325
        %v327 = vlaneseq
        %v328 = vshrl.u32 %v327, 7
        %v329 = vsub.s32 %v326, %v328
        %v330 = vrot.slane %v322, %v329
        %v332 = vunpack.c.l.s4 1934713408
        %v333 = vunpack.c.0.s8 %v332
        %v334 = vlaneseq
        %v335 = vshrl.u32 %v334, 7
        %v336 = vsub.s32 %v333, %v335
        %v337 = vrot.slane %v323, %v336
        %v338 = vcombine.high %v314, 0.0
        %v339 = vcombine.high %v321, 0.0
        %v340 = vcombine.high %v330, 0.0
        %v341 = vcombine.high %v337, 0.0
        %v342 = vcombine.low %v244, %v250
        %v343 = vcombine.high %v244, %v250
        %v345 = vunpack.c.l.s4 1983009808
        %v346 = vunpack.c.0.s8 %v345
        %v347 = vlaneseq
        %v348 = vshrl.u32 %v347, 7
        %v349 = vsub.s32 %v346, %v348
        %v350 = vrot.slane %v342, %v349
        %v352 = vunpack.c.l.s4 1983009808
        %v353 = vunpack.c.0.s8 %v352
        %v354 = vlaneseq
        %v355 = vshrl.u32 %v354, 7
        %v356 = vsub.s32 %v353, %v355
        %v357 = vrot.slane %v343, %v356
        %v358 = vcombine.low %v247, %v253
        %v359 = vcombine.high %v247, %v253
        %v361 = vunpack.c.l.s4 1983009808
        %v362 = vunpack.c.0.s8 %v361
        %v363 = vlaneseq
        %v364 = vshrl.u32 %v363, 7
        %v365 = vsub.s32 %v362, %v364
        %v366 = vrot.slane %v358, %v365
        %v368 = vunpack.c.l.s4 1983009808
        %v369 = vunpack.c.0.s8 %v368
        %v370 = vlaneseq
        %v371 = vshrl.u32 %v370, 7
        %v372 = vsub.s32 %v369, %v371
        %v373 = vrot.slane %v359, %v372
        %v374 = vcombine.low %v350, %v366
        %v375 = vcombine.high %v350, %v366
        %v377 = vunpack.c.l.s4 1934713408
        %v378 = vunpack.c.0.s8 %v377
        %v379 = vlaneseq
        %v380 = vshrl.u32 %v379, 7
        %v381 = vsub.s32 %v378, %v380
        %v382 = vrot.slane %v374, %v381
        %v384 = vunpack.c.l.s4 1934713408
        %v385 = vunpack.c.0.s8 %v384
        %v386 = vlaneseq
        %v387 = vshrl.u32 %v386, 7
        %v388 = vsub.s32 %v385, %v387
        %v389 = vrot.slane %v375, %v388
        %v390 = vcombine.low %v357, %v373
        %v391 = vcombine.high %v357, %v373
        %v393 = vunpack.c.l.s4 1934713408
        %v394 = vunpack.c.0.s8 %v393
        %v395 = vlaneseq
        %v396 = vshrl.u32 %v395, 7
        %v397 = vsub.s32 %v394, %v396
        %v398 = vrot.slane %v390, %v397
        %v400 = vunpack.c.l.s4 1934713408
        %v401 = vunpack.c.0.s8 %v400
        %v402 = vlaneseq
        %v403 = vshrl.u32 %v402, 7
        %v404 = vsub.s32 %v401, %v403
        %v405 = vrot.slane %v391, %v404
        %v406 = vcombine.high %v382, 0.0
        %v407 = vcombine.high %v389, 0.0
        %v408 = vcombine.high %v398, 0.0
        %v409 = vcombine.high %v405, 0.0
        %411 = vrot.lane.b32.xlu0 %v338, 16
        %v412 = vpop.permute.xlu0 %411
        %415 = vrot.lane.b32.xlu0 %v321, 32
        %v416 = vpop.permute.xlu0 %415
        %419 = vrot.lane.b32.xlu0 %v339, 48
        %v420 = vpop.permute.xlu0 %419
        %423 = vrot.lane.b32.xlu0 %v330, 64
        %v424 = vpop.permute.xlu0 %423
        %427 = vrot.lane.b32.xlu0 %v340, 80
        %v428 = vpop.permute.xlu0 %427
        %431 = vrot.lane.b32.xlu0 %v337, 96
        %v432 = vpop.permute.xlu0 %431
        %435 = vrot.lane.b32.xlu0 %v341, 112
        %v436 = vpop.permute.xlu0 %435
        %439 = vrot.lane.b32.xlu0 %v406, 16
        %v440 = vpop.permute.xlu0 %439
        %443 = vrot.lane.b32.xlu0 %v389, 32
        %v444 = vpop.permute.xlu0 %443
        %447 = vrot.lane.b32.xlu0 %v407, 48
        %v448 = vpop.permute.xlu0 %447
        %451 = vrot.lane.b32.xlu0 %v398, 64
        %v452 = vpop.permute.xlu0 %451
        %455 = vrot.lane.b32.xlu0 %v408, 80
        %v456 = vpop.permute.xlu0 %455
        %459 = vrot.lane.b32.xlu0 %v405, 96
        %v460 = vpop.permute.xlu0 %459
        %463 = vrot.lane.b32.xlu0 %v409, 112
        %v464 = vpop.permute.xlu0 %463
        %vm466 = vcmask 130048
        %v467 = vsel %vm466, %v314, %v412
        %vm468 = vcmask 261120
        %v469 = vsel %vm468, %v467, %v416
        %vm470 = vcmask 392192
        %v471 = vsel %vm470, %v469, %v420
        %vm472 = vcmask 523264
        %v473 = vsel %vm472, %v471, %v424
        %vm474 = vcmask 654336
        %v475 = vsel %vm474, %v473, %v428
        %vm476 = vcmask 785408
        %v477 = vsel %vm476, %v475, %v432
        %vm478 = vcmask 916480
        %v479 = vsel %vm478, %v477, %v436
        %v480 = vsel %vm466, %v382, %v440
        %v481 = vsel %vm468, %v480, %v444
        %v482 = vsel %vm470, %v481, %v448
        %v483 = vsel %vm472, %v482, %v452
        %v484 = vsel %vm474, %v483, %v456
        %v485 = vsel %vm476, %v484, %v460
        %v486 = vsel %vm478, %v485, %v464
        %491 = vrot.lane.b32.xlu0 %v266, 127
        %v492 = vpop.permute.xlu0 %491
        %493 = vrot.lane.b32.xlu0 %v244, 127
        %v494 = vpop.permute.xlu0 %493
        %495 = vrot.lane.b32.xlu0 %v267, 127
        %v496 = vpop.permute.xlu0 %495
        %497 = vrot.lane.b32.xlu0 %v247, 127
        %v498 = vpop.permute.xlu0 %497
        %499 = vrot.lane.b32.xlu0 %v268, 127
        %v500 = vpop.permute.xlu0 %499
        %501 = vrot.lane.b32.xlu0 %v250, 127
        %v502 = vpop.permute.xlu0 %501
        %503 = vrot.lane.b32.xlu0 %v269, 127
        %v504 = vpop.permute.xlu0 %503
        %505 = vrot.lane.b32.xlu0 %v253, 127
        %v506 = vpop.permute.xlu0 %505
        %v515 = vcombine.low %v492, %v500
        %v516 = vcombine.high %v492, %v500
        %v518 = vunpack.c.l.s4 1983009808
        %v519 = vunpack.c.0.s8 %v518
        %v520 = vlaneseq
        %v521 = vshrl.u32 %v520, 7
        %v522 = vsub.s32 %v519, %v521
        %v523 = vrot.slane %v515, %v522
        %v525 = vunpack.c.l.s4 1983009808
        %v526 = vunpack.c.0.s8 %v525
        %v527 = vlaneseq
        %v528 = vshrl.u32 %v527, 7
        %v529 = vsub.s32 %v526, %v528
        %v530 = vrot.slane %v516, %v529
        %v531 = vcombine.low %v496, %v504
        %v532 = vcombine.high %v496, %v504
        %v534 = vunpack.c.l.s4 1983009808
        %v535 = vunpack.c.0.s8 %v534
        %v536 = vlaneseq
        %v537 = vshrl.u32 %v536, 7
        %v538 = vsub.s32 %v535, %v537
        %v539 = vrot.slane %v531, %v538
        %v541 = vunpack.c.l.s4 1983009808
        %v542 = vunpack.c.0.s8 %v541
        %v543 = vlaneseq
        %v544 = vshrl.u32 %v543, 7
        %v545 = vsub.s32 %v542, %v544
        %v546 = vrot.slane %v532, %v545
        %v547 = vcombine.low %v523, %v539
        %v548 = vcombine.high %v523, %v539
        %v550 = vunpack.c.l.s4 1934713408
        %v551 = vunpack.c.0.s8 %v550
        %v552 = vlaneseq
        %v553 = vshrl.u32 %v552, 7
        %v554 = vsub.s32 %v551, %v553
        %v555 = vrot.slane %v547, %v554
        %v557 = vunpack.c.l.s4 1934713408
        %v558 = vunpack.c.0.s8 %v557
        %v559 = vlaneseq
        %v560 = vshrl.u32 %v559, 7
        %v561 = vsub.s32 %v558, %v560
        %v562 = vrot.slane %v548, %v561
        %v563 = vcombine.low %v530, %v546
        %v564 = vcombine.high %v530, %v546
        %v566 = vunpack.c.l.s4 1934713408
        %v567 = vunpack.c.0.s8 %v566
        %v568 = vlaneseq
        %v569 = vshrl.u32 %v568, 7
        %v570 = vsub.s32 %v567, %v569
        %v571 = vrot.slane %v563, %v570
        %v573 = vunpack.c.l.s4 1934713408
        %v574 = vunpack.c.0.s8 %v573
        %v575 = vlaneseq
        %v576 = vshrl.u32 %v575, 7
        %v577 = vsub.s32 %v574, %v576
        %v578 = vrot.slane %v564, %v577
        %v579 = vcombine.high %v555, 0.0
        %v580 = vcombine.high %v562, 0.0
        %v581 = vcombine.high %v571, 0.0
        %v582 = vcombine.high %v578, 0.0
        %v583 = vcombine.low %v494, %v502
        %v584 = vcombine.high %v494, %v502
        %v586 = vunpack.c.l.s4 1983009808
        %v587 = vunpack.c.0.s8 %v586
        %v588 = vlaneseq
        %v589 = vshrl.u32 %v588, 7
        %v590 = vsub.s32 %v587, %v589
        %v591 = vrot.slane %v583, %v590
        %v593 = vunpack.c.l.s4 1983009808
        %v594 = vunpack.c.0.s8 %v593
        %v595 = vlaneseq
        %v596 = vshrl.u32 %v595, 7
        %v597 = vsub.s32 %v594, %v596
        %v598 = vrot.slane %v584, %v597
        %v599 = vcombine.low %v498, %v506
        %v600 = vcombine.high %v498, %v506
        %v602 = vunpack.c.l.s4 1983009808
        %v603 = vunpack.c.0.s8 %v602
        %v604 = vlaneseq
        %v605 = vshrl.u32 %v604, 7
        %v606 = vsub.s32 %v603, %v605
        %v607 = vrot.slane %v599, %v606
        %v609 = vunpack.c.l.s4 1983009808
        %v610 = vunpack.c.0.s8 %v609
        %v611 = vlaneseq
        %v612 = vshrl.u32 %v611, 7
        %v613 = vsub.s32 %v610, %v612
        %v614 = vrot.slane %v600, %v613
        %v615 = vcombine.low %v591, %v607
        %v616 = vcombine.high %v591, %v607
        %v618 = vunpack.c.l.s4 1934713408
        %v619 = vunpack.c.0.s8 %v618
        %v620 = vlaneseq
        %v621 = vshrl.u32 %v620, 7
        %v622 = vsub.s32 %v619, %v621
        %v623 = vrot.slane %v615, %v622
        %v625 = vunpack.c.l.s4 1934713408
        %v626 = vunpack.c.0.s8 %v625
        %v627 = vlaneseq
        %v628 = vshrl.u32 %v627, 7
        %v629 = vsub.s32 %v626, %v628
        %v630 = vrot.slane %v616, %v629
        %v631 = vcombine.low %v598, %v614
        %v632 = vcombine.high %v598, %v614
        %v634 = vunpack.c.l.s4 1934713408
        %v635 = vunpack.c.0.s8 %v634
        %v636 = vlaneseq
        %v637 = vshrl.u32 %v636, 7
        %v638 = vsub.s32 %v635, %v637
        %v639 = vrot.slane %v631, %v638
        %v641 = vunpack.c.l.s4 1934713408
        %v642 = vunpack.c.0.s8 %v641
        %v643 = vlaneseq
        %v644 = vshrl.u32 %v643, 7
        %v645 = vsub.s32 %v642, %v644
        %v646 = vrot.slane %v632, %v645
        %v647 = vcombine.high %v623, 0.0
        %v648 = vcombine.high %v630, 0.0
        %v649 = vcombine.high %v639, 0.0
        %v650 = vcombine.high %v646, 0.0
        %652 = vrot.lane.b32.xlu0 %v579, 16
        %v653 = vpop.permute.xlu0 %652
        %656 = vrot.lane.b32.xlu0 %v562, 32
        %v657 = vpop.permute.xlu0 %656
        %660 = vrot.lane.b32.xlu0 %v580, 48
        %v661 = vpop.permute.xlu0 %660
        %664 = vrot.lane.b32.xlu0 %v571, 64
        %v665 = vpop.permute.xlu0 %664
        %668 = vrot.lane.b32.xlu0 %v581, 80
        %v669 = vpop.permute.xlu0 %668
        %672 = vrot.lane.b32.xlu0 %v578, 96
        %v673 = vpop.permute.xlu0 %672
        %676 = vrot.lane.b32.xlu0 %v582, 112
        %v677 = vpop.permute.xlu0 %676
        %680 = vrot.lane.b32.xlu0 %v647, 16
        %v681 = vpop.permute.xlu0 %680
        %684 = vrot.lane.b32.xlu0 %v630, 32
        %v685 = vpop.permute.xlu0 %684
        %688 = vrot.lane.b32.xlu0 %v648, 48
        %v689 = vpop.permute.xlu0 %688
        %692 = vrot.lane.b32.xlu0 %v639, 64
        %v693 = vpop.permute.xlu0 %692
        %696 = vrot.lane.b32.xlu0 %v649, 80
        %v697 = vpop.permute.xlu0 %696
        %700 = vrot.lane.b32.xlu0 %v646, 96
        %v701 = vpop.permute.xlu0 %700
        %704 = vrot.lane.b32.xlu0 %v650, 112
        %v705 = vpop.permute.xlu0 %704
        %v707 = vsel %vm466, %v555, %v653
        %v708 = vsel %vm468, %v707, %v657
        %v709 = vsel %vm470, %v708, %v661
        %v710 = vsel %vm472, %v709, %v665
        %v711 = vsel %vm474, %v710, %v669
        %v712 = vsel %vm476, %v711, %v673
        %v713 = vsel %vm478, %v712, %v677
        %v714 = vsel %vm466, %v623, %v681
        %v715 = vsel %vm468, %v714, %v685
        %v716 = vsel %vm470, %v715, %v689
        %v717 = vsel %vm472, %v716, %v693
        %v718 = vsel %vm474, %v717, %v697
        %v719 = vsel %vm476, %v718, %v701
        %v720 = vsel %vm478, %v719, %v705
        %721 = vrot.lane.b32.xlu0 %v266, 126
        %v722 = vpop.permute.xlu0 %721
        %723 = vrot.lane.b32.xlu0 %v244, 126
        %v724 = vpop.permute.xlu0 %723
        %725 = vrot.lane.b32.xlu0 %v267, 126
        %v726 = vpop.permute.xlu0 %725
        %727 = vrot.lane.b32.xlu0 %v247, 126
        %v728 = vpop.permute.xlu0 %727
        %729 = vrot.lane.b32.xlu0 %v268, 126
        %v730 = vpop.permute.xlu0 %729
        %731 = vrot.lane.b32.xlu0 %v250, 126
        %v732 = vpop.permute.xlu0 %731
        %733 = vrot.lane.b32.xlu0 %v269, 126
        %v734 = vpop.permute.xlu0 %733
        %735 = vrot.lane.b32.xlu0 %v253, 126
        %v736 = vpop.permute.xlu0 %735
        %v745 = vcombine.low %v722, %v730
        %v746 = vcombine.high %v722, %v730
        %v748 = vunpack.c.l.s4 1983009808
        %v749 = vunpack.c.0.s8 %v748
        %v750 = vlaneseq
        %v751 = vshrl.u32 %v750, 7
        %v752 = vsub.s32 %v749, %v751
        %v753 = vrot.slane %v745, %v752
        %v755 = vunpack.c.l.s4 1983009808
        %v756 = vunpack.c.0.s8 %v755
        %v757 = vlaneseq
        %v758 = vshrl.u32 %v757, 7
        %v759 = vsub.s32 %v756, %v758
        %v760 = vrot.slane %v746, %v759
        %v761 = vcombine.low %v726, %v734
        %v762 = vcombine.high %v726, %v734
        %v764 = vunpack.c.l.s4 1983009808
        %v765 = vunpack.c.0.s8 %v764
        %v766 = vlaneseq
        %v767 = vshrl.u32 %v766, 7
        %v768 = vsub.s32 %v765, %v767
        %v769 = vrot.slane %v761, %v768
        %v771 = vunpack.c.l.s4 1983009808
        %v772 = vunpack.c.0.s8 %v771
        %v773 = vlaneseq
        %v774 = vshrl.u32 %v773, 7
        %v775 = vsub.s32 %v772, %v774
        %v776 = vrot.slane %v762, %v775
        %v777 = vcombine.low %v753, %v769
        %v778 = vcombine.high %v753, %v769
        %v780 = vunpack.c.l.s4 1934713408
        %v781 = vunpack.c.0.s8 %v780
        %v782 = vlaneseq
        %v783 = vshrl.u32 %v782, 7
        %v784 = vsub.s32 %v781, %v783
        %v785 = vrot.slane %v777, %v784
        %v787 = vunpack.c.l.s4 1934713408
        %v788 = vunpack.c.0.s8 %v787
        %v789 = vlaneseq
        %v790 = vshrl.u32 %v789, 7
        %v791 = vsub.s32 %v788, %v790
        %v792 = vrot.slane %v778, %v791
        %v793 = vcombine.low %v760, %v776
        %v794 = vcombine.high %v760, %v776
        %v796 = vunpack.c.l.s4 1934713408
        %v797 = vunpack.c.0.s8 %v796
        %v798 = vlaneseq
        %v799 = vshrl.u32 %v798, 7
        %v800 = vsub.s32 %v797, %v799
        %v801 = vrot.slane %v793, %v800
        %v803 = vunpack.c.l.s4 1934713408
        %v804 = vunpack.c.0.s8 %v803
        %v805 = vlaneseq
        %v806 = vshrl.u32 %v805, 7
        %v807 = vsub.s32 %v804, %v806
        %v808 = vrot.slane %v794, %v807
        %v809 = vcombine.high %v785, 0.0
        %v810 = vcombine.high %v792, 0.0
        %v811 = vcombine.high %v801, 0.0
        %v812 = vcombine.high %v808, 0.0
        %v813 = vcombine.low %v724, %v732
        %v814 = vcombine.high %v724, %v732
        %v816 = vunpack.c.l.s4 1983009808
        %v817 = vunpack.c.0.s8 %v816
        %v818 = vlaneseq
        %v819 = vshrl.u32 %v818, 7
        %v820 = vsub.s32 %v817, %v819
        %v821 = vrot.slane %v813, %v820
        %v823 = vunpack.c.l.s4 1983009808
        %v824 = vunpack.c.0.s8 %v823
        %v825 = vlaneseq
        %v826 = vshrl.u32 %v825, 7
        %v827 = vsub.s32 %v824, %v826
        %v828 = vrot.slane %v814, %v827
        %v829 = vcombine.low %v728, %v736
        %v830 = vcombine.high %v728, %v736
        %v832 = vunpack.c.l.s4 1983009808
        %v833 = vunpack.c.0.s8 %v832
        %v834 = vlaneseq
        %v835 = vshrl.u32 %v834, 7
        %v836 = vsub.s32 %v833, %v835
        %v837 = vrot.slane %v829, %v836
        %v839 = vunpack.c.l.s4 1983009808
        %v840 = vunpack.c.0.s8 %v839
        %v841 = vlaneseq
        %v842 = vshrl.u32 %v841, 7
        %v843 = vsub.s32 %v840, %v842
        %v844 = vrot.slane %v830, %v843
        %v845 = vcombine.low %v821, %v837
        %v846 = vcombine.high %v821, %v837
        %v848 = vunpack.c.l.s4 1934713408
        %v849 = vunpack.c.0.s8 %v848
        %v850 = vlaneseq
        %v851 = vshrl.u32 %v850, 7
        %v852 = vsub.s32 %v849, %v851
        %v853 = vrot.slane %v845, %v852
        %v855 = vunpack.c.l.s4 1934713408
        %v856 = vunpack.c.0.s8 %v855
        %v857 = vlaneseq
        %v858 = vshrl.u32 %v857, 7
        %v859 = vsub.s32 %v856, %v858
        %v860 = vrot.slane %v846, %v859
        %v861 = vcombine.low %v828, %v844
        %v862 = vcombine.high %v828, %v844
        %v864 = vunpack.c.l.s4 1934713408
        %v865 = vunpack.c.0.s8 %v864
        %v866 = vlaneseq
        %v867 = vshrl.u32 %v866, 7
        %v868 = vsub.s32 %v865, %v867
        %v869 = vrot.slane %v861, %v868
        %v871 = vunpack.c.l.s4 1934713408
        %v872 = vunpack.c.0.s8 %v871
        %v873 = vlaneseq
        %v874 = vshrl.u32 %v873, 7
        %v875 = vsub.s32 %v872, %v874
        %v876 = vrot.slane %v862, %v875
        %v877 = vcombine.high %v853, 0.0
        %v878 = vcombine.high %v860, 0.0
        %v879 = vcombine.high %v869, 0.0
        %v880 = vcombine.high %v876, 0.0
        %882 = vrot.lane.b32.xlu0 %v809, 16
        %v883 = vpop.permute.xlu0 %882
        %886 = vrot.lane.b32.xlu0 %v792, 32
        %v887 = vpop.permute.xlu0 %886
        %890 = vrot.lane.b32.xlu0 %v810, 48
        %v891 = vpop.permute.xlu0 %890
        %894 = vrot.lane.b32.xlu0 %v801, 64
        %v895 = vpop.permute.xlu0 %894
        %898 = vrot.lane.b32.xlu0 %v811, 80
        %v899 = vpop.permute.xlu0 %898
        %902 = vrot.lane.b32.xlu0 %v808, 96
        %v903 = vpop.permute.xlu0 %902
        %906 = vrot.lane.b32.xlu0 %v812, 112
        %v907 = vpop.permute.xlu0 %906
        %910 = vrot.lane.b32.xlu0 %v877, 16
        %v911 = vpop.permute.xlu0 %910
        %914 = vrot.lane.b32.xlu0 %v860, 32
        %v915 = vpop.permute.xlu0 %914
        %918 = vrot.lane.b32.xlu0 %v878, 48
        %v919 = vpop.permute.xlu0 %918
        %922 = vrot.lane.b32.xlu0 %v869, 64
        %v923 = vpop.permute.xlu0 %922
        %926 = vrot.lane.b32.xlu0 %v879, 80
        %v927 = vpop.permute.xlu0 %926
        %930 = vrot.lane.b32.xlu0 %v876, 96
        %v931 = vpop.permute.xlu0 %930
        %934 = vrot.lane.b32.xlu0 %v880, 112
        %v935 = vpop.permute.xlu0 %934
        %v937 = vsel %vm466, %v785, %v883
        %v938 = vsel %vm468, %v937, %v887
        %v939 = vsel %vm470, %v938, %v891
        %v940 = vsel %vm472, %v939, %v895
        %v941 = vsel %vm474, %v940, %v899
        %v942 = vsel %vm476, %v941, %v903
        %v943 = vsel %vm478, %v942, %v907
        %v944 = vsel %vm466, %v853, %v911
        %v945 = vsel %vm468, %v944, %v915
        %v946 = vsel %vm470, %v945, %v919
        %v947 = vsel %vm472, %v946, %v923
        %v948 = vsel %vm474, %v947, %v927
        %v949 = vsel %vm476, %v948, %v931
        %v950 = vsel %vm478, %v949, %v935
        %vm955 = vcmask 1046528
        %v956 = vrot.slane %v266, 1
        %v957 = vrot.slane %v244, 1
        %v958 = vsel %vm955, %v956, %v957
        %v959 = vrot.slane %v270, 1
        %v960 = vsel %vm955, %v957, %v959
        %v961 = vrot.slane %v267, 1
        %v962 = vrot.slane %v247, 1
        %v963 = vsel %vm955, %v961, %v962
        %v964 = vrot.slane %v271, 1
        %v965 = vsel %vm955, %v962, %v964
        %v966 = vrot.slane %v268, 1
        %v967 = vrot.slane %v250, 1
        %v968 = vsel %vm955, %v966, %v967
        %v969 = vrot.slane %v272, 1
        %v970 = vsel %vm955, %v967, %v969
        %v971 = vrot.slane %v269, 1
        %v972 = vrot.slane %v253, 1
        %v973 = vsel %vm955, %v971, %v972
        %v974 = vrot.slane %v273, 1
        %v975 = vsel %vm955, %v972, %v974
        %v984 = vcombine.low %v958, %v968
        %v985 = vcombine.high %v958, %v968
        %v987 = vunpack.c.l.s4 1983009808
        %v988 = vunpack.c.0.s8 %v987
        %v989 = vlaneseq
        %v990 = vshrl.u32 %v989, 7
        %v991 = vsub.s32 %v988, %v990
        %v992 = vrot.slane %v984, %v991
        %v994 = vunpack.c.l.s4 1983009808
        %v995 = vunpack.c.0.s8 %v994
        %v996 = vlaneseq
        %v997 = vshrl.u32 %v996, 7
        %v998 = vsub.s32 %v995, %v997
        %v999 = vrot.slane %v985, %v998
        %v1000 = vcombine.low %v963, %v973
        %v1001 = vcombine.high %v963, %v973
        %v1003 = vunpack.c.l.s4 1983009808
        %v1004 = vunpack.c.0.s8 %v1003
        %v1005 = vlaneseq
        %v1006 = vshrl.u32 %v1005, 7
        %v1007 = vsub.s32 %v1004, %v1006
        %v1008 = vrot.slane %v1000, %v1007
        %v1010 = vunpack.c.l.s4 1983009808
        %v1011 = vunpack.c.0.s8 %v1010
        %v1012 = vlaneseq
        %v1013 = vshrl.u32 %v1012, 7
        %v1014 = vsub.s32 %v1011, %v1013
        %v1015 = vrot.slane %v1001, %v1014
        %v1016 = vcombine.low %v992, %v1008
        %v1017 = vcombine.high %v992, %v1008
        %v1019 = vunpack.c.l.s4 1934713408
        %v1020 = vunpack.c.0.s8 %v1019
        %v1021 = vlaneseq
        %v1022 = vshrl.u32 %v1021, 7
        %v1023 = vsub.s32 %v1020, %v1022
        %v1024 = vrot.slane %v1016, %v1023
        %v1026 = vunpack.c.l.s4 1934713408
        %v1027 = vunpack.c.0.s8 %v1026
        %v1028 = vlaneseq
        %v1029 = vshrl.u32 %v1028, 7
        %v1030 = vsub.s32 %v1027, %v1029
        %v1031 = vrot.slane %v1017, %v1030
        %v1032 = vcombine.low %v999, %v1015
        %v1033 = vcombine.high %v999, %v1015
        %v1035 = vunpack.c.l.s4 1934713408
        %v1036 = vunpack.c.0.s8 %v1035
        %v1037 = vlaneseq
        %v1038 = vshrl.u32 %v1037, 7
        %v1039 = vsub.s32 %v1036, %v1038
        %v1040 = vrot.slane %v1032, %v1039
        %v1042 = vunpack.c.l.s4 1934713408
        %v1043 = vunpack.c.0.s8 %v1042
        %v1044 = vlaneseq
        %v1045 = vshrl.u32 %v1044, 7
        %v1046 = vsub.s32 %v1043, %v1045
        %v1047 = vrot.slane %v1033, %v1046
        %v1048 = vcombine.high %v1024, 0.0
        %v1049 = vcombine.high %v1031, 0.0
        %v1050 = vcombine.high %v1040, 0.0
        %v1051 = vcombine.high %v1047, 0.0
        %v1052 = vcombine.low %v960, %v970
        %v1053 = vcombine.high %v960, %v970
        %v1055 = vunpack.c.l.s4 1983009808
        %v1056 = vunpack.c.0.s8 %v1055
        %v1057 = vlaneseq
        %v1058 = vshrl.u32 %v1057, 7
        %v1059 = vsub.s32 %v1056, %v1058
        %v1060 = vrot.slane %v1052, %v1059
        %v1062 = vunpack.c.l.s4 1983009808
        %v1063 = vunpack.c.0.s8 %v1062
        %v1064 = vlaneseq
        %v1065 = vshrl.u32 %v1064, 7
        %v1066 = vsub.s32 %v1063, %v1065
        %v1067 = vrot.slane %v1053, %v1066
        %v1068 = vcombine.low %v965, %v975
        %v1069 = vcombine.high %v965, %v975
        %v1071 = vunpack.c.l.s4 1983009808
        %v1072 = vunpack.c.0.s8 %v1071
        %v1073 = vlaneseq
        %v1074 = vshrl.u32 %v1073, 7
        %v1075 = vsub.s32 %v1072, %v1074
        %v1076 = vrot.slane %v1068, %v1075
        %v1078 = vunpack.c.l.s4 1983009808
        %v1079 = vunpack.c.0.s8 %v1078
        %v1080 = vlaneseq
        %v1081 = vshrl.u32 %v1080, 7
        %v1082 = vsub.s32 %v1079, %v1081
        %v1083 = vrot.slane %v1069, %v1082
        %v1084 = vcombine.low %v1060, %v1076
        %v1085 = vcombine.high %v1060, %v1076
        %v1087 = vunpack.c.l.s4 1934713408
        %v1088 = vunpack.c.0.s8 %v1087
        %v1089 = vlaneseq
        %v1090 = vshrl.u32 %v1089, 7
        %v1091 = vsub.s32 %v1088, %v1090
        %v1092 = vrot.slane %v1084, %v1091
        %v1094 = vunpack.c.l.s4 1934713408
        %v1095 = vunpack.c.0.s8 %v1094
        %v1096 = vlaneseq
        %v1097 = vshrl.u32 %v1096, 7
        %v1098 = vsub.s32 %v1095, %v1097
        %v1099 = vrot.slane %v1085, %v1098
        %v1100 = vcombine.low %v1067, %v1083
        %v1101 = vcombine.high %v1067, %v1083
        %v1103 = vunpack.c.l.s4 1934713408
        %v1104 = vunpack.c.0.s8 %v1103
        %v1105 = vlaneseq
        %v1106 = vshrl.u32 %v1105, 7
        %v1107 = vsub.s32 %v1104, %v1106
        %v1108 = vrot.slane %v1100, %v1107
        %v1110 = vunpack.c.l.s4 1934713408
        %v1111 = vunpack.c.0.s8 %v1110
        %v1112 = vlaneseq
        %v1113 = vshrl.u32 %v1112, 7
        %v1114 = vsub.s32 %v1111, %v1113
        %v1115 = vrot.slane %v1101, %v1114
        %v1116 = vcombine.high %v1092, 0.0
        %v1117 = vcombine.high %v1099, 0.0
        %v1118 = vcombine.high %v1108, 0.0
        %v1119 = vcombine.high %v1115, 0.0
        %1121 = vrot.lane.b32.xlu0 %v1048, 16
        %v1122 = vpop.permute.xlu0 %1121
        %1125 = vrot.lane.b32.xlu0 %v1031, 32
        %v1126 = vpop.permute.xlu0 %1125
        %1129 = vrot.lane.b32.xlu0 %v1049, 48
        %v1130 = vpop.permute.xlu0 %1129
        %1133 = vrot.lane.b32.xlu0 %v1040, 64
        %v1134 = vpop.permute.xlu0 %1133
        %1137 = vrot.lane.b32.xlu0 %v1050, 80
        %v1138 = vpop.permute.xlu0 %1137
        %1141 = vrot.lane.b32.xlu0 %v1047, 96
        %v1142 = vpop.permute.xlu0 %1141
        %1145 = vrot.lane.b32.xlu0 %v1051, 112
        %v1146 = vpop.permute.xlu0 %1145
        %1149 = vrot.lane.b32.xlu0 %v1116, 16
        %v1150 = vpop.permute.xlu0 %1149
        %1153 = vrot.lane.b32.xlu0 %v1099, 32
        %v1154 = vpop.permute.xlu0 %1153
        %1157 = vrot.lane.b32.xlu0 %v1117, 48
        %v1158 = vpop.permute.xlu0 %1157
        %1161 = vrot.lane.b32.xlu0 %v1108, 64
        %v1162 = vpop.permute.xlu0 %1161
        %1165 = vrot.lane.b32.xlu0 %v1118, 80
        %v1166 = vpop.permute.xlu0 %1165
        %1169 = vrot.lane.b32.xlu0 %v1115, 96
        %v1170 = vpop.permute.xlu0 %1169
        %1173 = vrot.lane.b32.xlu0 %v1119, 112
        %v1174 = vpop.permute.xlu0 %1173
        %v1176 = vsel %vm466, %v1024, %v1122
        %v1177 = vsel %vm468, %v1176, %v1126
        %v1178 = vsel %vm470, %v1177, %v1130
        %v1179 = vsel %vm472, %v1178, %v1134
        %v1180 = vsel %vm474, %v1179, %v1138
        %v1181 = vsel %vm476, %v1180, %v1142
        %v1182 = vsel %vm478, %v1181, %v1146
        %v1183 = vsel %vm466, %v1092, %v1150
        %v1184 = vsel %vm468, %v1183, %v1154
        %v1185 = vsel %vm470, %v1184, %v1158
        %v1186 = vsel %vm472, %v1185, %v1162
        %v1187 = vsel %vm474, %v1186, %v1166
        %v1188 = vsel %vm476, %v1187, %v1170
        %v1189 = vsel %vm478, %v1188, %v1174
        %1190 = vrot.lane.b32.xlu0 %v958, 127
        %v1191 = vpop.permute.xlu0 %1190
        %1192 = vrot.lane.b32.xlu0 %v960, 127
        %v1193 = vpop.permute.xlu0 %1192
        %1194 = vrot.lane.b32.xlu0 %v963, 127
        %v1195 = vpop.permute.xlu0 %1194
        %1196 = vrot.lane.b32.xlu0 %v965, 127
        %v1197 = vpop.permute.xlu0 %1196
        %1198 = vrot.lane.b32.xlu0 %v968, 127
        %v1199 = vpop.permute.xlu0 %1198
        %1200 = vrot.lane.b32.xlu0 %v970, 127
        %v1201 = vpop.permute.xlu0 %1200
        %1202 = vrot.lane.b32.xlu0 %v973, 127
        %v1203 = vpop.permute.xlu0 %1202
        %1204 = vrot.lane.b32.xlu0 %v975, 127
        %v1205 = vpop.permute.xlu0 %1204
        %v1214 = vcombine.low %v1191, %v1199
        %v1215 = vcombine.high %v1191, %v1199
        %v1217 = vunpack.c.l.s4 1983009808
        %v1218 = vunpack.c.0.s8 %v1217
        %v1219 = vlaneseq
        %v1220 = vshrl.u32 %v1219, 7
        %v1221 = vsub.s32 %v1218, %v1220
        %v1222 = vrot.slane %v1214, %v1221
        %v1224 = vunpack.c.l.s4 1983009808
        %v1225 = vunpack.c.0.s8 %v1224
        %v1226 = vlaneseq
        %v1227 = vshrl.u32 %v1226, 7
        %v1228 = vsub.s32 %v1225, %v1227
        %v1229 = vrot.slane %v1215, %v1228
        %v1230 = vcombine.low %v1195, %v1203
        %v1231 = vcombine.high %v1195, %v1203
        %v1233 = vunpack.c.l.s4 1983009808
        %v1234 = vunpack.c.0.s8 %v1233
        %v1235 = vlaneseq
        %v1236 = vshrl.u32 %v1235, 7
        %v1237 = vsub.s32 %v1234, %v1236
        %v1238 = vrot.slane %v1230, %v1237
        %v1240 = vunpack.c.l.s4 1983009808
        %v1241 = vunpack.c.0.s8 %v1240
        %v1242 = vlaneseq
        %v1243 = vshrl.u32 %v1242, 7
        %v1244 = vsub.s32 %v1241, %v1243
        %v1245 = vrot.slane %v1231, %v1244
        %v1246 = vcombine.low %v1222, %v1238
        %v1247 = vcombine.high %v1222, %v1238
        %v1249 = vunpack.c.l.s4 1934713408
        %v1250 = vunpack.c.0.s8 %v1249
        %v1251 = vlaneseq
        %v1252 = vshrl.u32 %v1251, 7
        %v1253 = vsub.s32 %v1250, %v1252
        %v1254 = vrot.slane %v1246, %v1253
        %v1256 = vunpack.c.l.s4 1934713408
        %v1257 = vunpack.c.0.s8 %v1256
        %v1258 = vlaneseq
        %v1259 = vshrl.u32 %v1258, 7
        %v1260 = vsub.s32 %v1257, %v1259
        %v1261 = vrot.slane %v1247, %v1260
        %v1262 = vcombine.low %v1229, %v1245
        %v1263 = vcombine.high %v1229, %v1245
        %v1265 = vunpack.c.l.s4 1934713408
        %v1266 = vunpack.c.0.s8 %v1265
        %v1267 = vlaneseq
        %v1268 = vshrl.u32 %v1267, 7
        %v1269 = vsub.s32 %v1266, %v1268
        %v1270 = vrot.slane %v1262, %v1269
        %v1272 = vunpack.c.l.s4 1934713408
        %v1273 = vunpack.c.0.s8 %v1272
        %v1274 = vlaneseq
        %v1275 = vshrl.u32 %v1274, 7
        %v1276 = vsub.s32 %v1273, %v1275
        %v1277 = vrot.slane %v1263, %v1276
        %v1278 = vcombine.high %v1254, 0.0
        %v1279 = vcombine.high %v1261, 0.0
        %v1280 = vcombine.high %v1270, 0.0
        %v1281 = vcombine.high %v1277, 0.0
        %v1282 = vcombine.low %v1193, %v1201
        %v1283 = vcombine.high %v1193, %v1201
        %v1285 = vunpack.c.l.s4 1983009808
        %v1286 = vunpack.c.0.s8 %v1285
        %v1287 = vlaneseq
        %v1288 = vshrl.u32 %v1287, 7
        %v1289 = vsub.s32 %v1286, %v1288
        %v1290 = vrot.slane %v1282, %v1289
        %v1292 = vunpack.c.l.s4 1983009808
        %v1293 = vunpack.c.0.s8 %v1292
        %v1294 = vlaneseq
        %v1295 = vshrl.u32 %v1294, 7
        %v1296 = vsub.s32 %v1293, %v1295
        %v1297 = vrot.slane %v1283, %v1296
        %v1298 = vcombine.low %v1197, %v1205
        %v1299 = vcombine.high %v1197, %v1205
        %v1301 = vunpack.c.l.s4 1983009808
        %v1302 = vunpack.c.0.s8 %v1301
        %v1303 = vlaneseq
        %v1304 = vshrl.u32 %v1303, 7
        %v1305 = vsub.s32 %v1302, %v1304
        %v1306 = vrot.slane %v1298, %v1305
        %v1308 = vunpack.c.l.s4 1983009808
        %v1309 = vunpack.c.0.s8 %v1308
        %v1310 = vlaneseq
        %v1311 = vshrl.u32 %v1310, 7
        %v1312 = vsub.s32 %v1309, %v1311
        %v1313 = vrot.slane %v1299, %v1312
        %v1314 = vcombine.low %v1290, %v1306
        %v1315 = vcombine.high %v1290, %v1306
        %v1317 = vunpack.c.l.s4 1934713408
        %v1318 = vunpack.c.0.s8 %v1317
        %v1319 = vlaneseq
        %v1320 = vshrl.u32 %v1319, 7
        %v1321 = vsub.s32 %v1318, %v1320
        %v1322 = vrot.slane %v1314, %v1321
        %v1324 = vunpack.c.l.s4 1934713408
        %v1325 = vunpack.c.0.s8 %v1324
        %v1326 = vlaneseq
        %v1327 = vshrl.u32 %v1326, 7
        %v1328 = vsub.s32 %v1325, %v1327
        %v1329 = vrot.slane %v1315, %v1328
        %v1330 = vcombine.low %v1297, %v1313
        %v1331 = vcombine.high %v1297, %v1313
        %v1333 = vunpack.c.l.s4 1934713408
        %v1334 = vunpack.c.0.s8 %v1333
        %v1335 = vlaneseq
        %v1336 = vshrl.u32 %v1335, 7
        %v1337 = vsub.s32 %v1334, %v1336
        %v1338 = vrot.slane %v1330, %v1337
        %v1340 = vunpack.c.l.s4 1934713408
        %v1341 = vunpack.c.0.s8 %v1340
        %v1342 = vlaneseq
        %v1343 = vshrl.u32 %v1342, 7
        %v1344 = vsub.s32 %v1341, %v1343
        %v1345 = vrot.slane %v1331, %v1344
        %v1346 = vcombine.high %v1322, 0.0
        %v1347 = vcombine.high %v1329, 0.0
        %v1348 = vcombine.high %v1338, 0.0
        %v1349 = vcombine.high %v1345, 0.0
        %1351 = vrot.lane.b32.xlu0 %v1278, 16
        %v1352 = vpop.permute.xlu0 %1351
        %1355 = vrot.lane.b32.xlu0 %v1261, 32
        %v1356 = vpop.permute.xlu0 %1355
        %1359 = vrot.lane.b32.xlu0 %v1279, 48
        %v1360 = vpop.permute.xlu0 %1359
        %1363 = vrot.lane.b32.xlu0 %v1270, 64
        %v1364 = vpop.permute.xlu0 %1363
        %1367 = vrot.lane.b32.xlu0 %v1280, 80
        %v1368 = vpop.permute.xlu0 %1367
        %1371 = vrot.lane.b32.xlu0 %v1277, 96
        %v1372 = vpop.permute.xlu0 %1371
        %1375 = vrot.lane.b32.xlu0 %v1281, 112
        %v1376 = vpop.permute.xlu0 %1375
        %1379 = vrot.lane.b32.xlu0 %v1346, 16
        %v1380 = vpop.permute.xlu0 %1379
        %1383 = vrot.lane.b32.xlu0 %v1329, 32
        %v1384 = vpop.permute.xlu0 %1383
        %1387 = vrot.lane.b32.xlu0 %v1347, 48
        %v1388 = vpop.permute.xlu0 %1387
        %1391 = vrot.lane.b32.xlu0 %v1338, 64
        %v1392 = vpop.permute.xlu0 %1391
        %1395 = vrot.lane.b32.xlu0 %v1348, 80
        %v1396 = vpop.permute.xlu0 %1395
        %1399 = vrot.lane.b32.xlu0 %v1345, 96
        %v1400 = vpop.permute.xlu0 %1399
        %1403 = vrot.lane.b32.xlu0 %v1349, 112
        %v1404 = vpop.permute.xlu0 %1403
        %v1406 = vsel %vm466, %v1254, %v1352
        %v1407 = vsel %vm468, %v1406, %v1356
        %v1408 = vsel %vm470, %v1407, %v1360
        %v1409 = vsel %vm472, %v1408, %v1364
        %v1410 = vsel %vm474, %v1409, %v1368
        %v1411 = vsel %vm476, %v1410, %v1372
        %v1412 = vsel %vm478, %v1411, %v1376
        %v1413 = vsel %vm466, %v1322, %v1380
        %v1414 = vsel %vm468, %v1413, %v1384
        %v1415 = vsel %vm470, %v1414, %v1388
        %v1416 = vsel %vm472, %v1415, %v1392
        %v1417 = vsel %vm474, %v1416, %v1396
        %v1418 = vsel %vm476, %v1417, %v1400
        %v1419 = vsel %vm478, %v1418, %v1404
        %1420 = vrot.lane.b32.xlu0 %v958, 126
        %v1421 = vpop.permute.xlu0 %1420
        %1422 = vrot.lane.b32.xlu0 %v960, 126
        %v1423 = vpop.permute.xlu0 %1422
        %1424 = vrot.lane.b32.xlu0 %v963, 126
        %v1425 = vpop.permute.xlu0 %1424
        %1426 = vrot.lane.b32.xlu0 %v965, 126
        %v1427 = vpop.permute.xlu0 %1426
        %1428 = vrot.lane.b32.xlu0 %v968, 126
        %v1429 = vpop.permute.xlu0 %1428
        %1430 = vrot.lane.b32.xlu0 %v970, 126
        %v1431 = vpop.permute.xlu0 %1430
        %1432 = vrot.lane.b32.xlu0 %v973, 126
        %v1433 = vpop.permute.xlu0 %1432
        %1434 = vrot.lane.b32.xlu0 %v975, 126
        %v1435 = vpop.permute.xlu0 %1434
        %v1444 = vcombine.low %v1421, %v1429
        %v1445 = vcombine.high %v1421, %v1429
        %v1447 = vunpack.c.l.s4 1983009808
        %v1448 = vunpack.c.0.s8 %v1447
        %v1449 = vlaneseq
        %v1450 = vshrl.u32 %v1449, 7
        %v1451 = vsub.s32 %v1448, %v1450
        %v1452 = vrot.slane %v1444, %v1451
        %v1454 = vunpack.c.l.s4 1983009808
        %v1455 = vunpack.c.0.s8 %v1454
        %v1456 = vlaneseq
        %v1457 = vshrl.u32 %v1456, 7
        %v1458 = vsub.s32 %v1455, %v1457
        %v1459 = vrot.slane %v1445, %v1458
        %v1460 = vcombine.low %v1425, %v1433
        %v1461 = vcombine.high %v1425, %v1433
        %v1463 = vunpack.c.l.s4 1983009808
        %v1464 = vunpack.c.0.s8 %v1463
        %v1465 = vlaneseq
        %v1466 = vshrl.u32 %v1465, 7
        %v1467 = vsub.s32 %v1464, %v1466
        %v1468 = vrot.slane %v1460, %v1467
        %v1470 = vunpack.c.l.s4 1983009808
        %v1471 = vunpack.c.0.s8 %v1470
        %v1472 = vlaneseq
        %v1473 = vshrl.u32 %v1472, 7
        %v1474 = vsub.s32 %v1471, %v1473
        %v1475 = vrot.slane %v1461, %v1474
        %v1476 = vcombine.low %v1452, %v1468
        %v1477 = vcombine.high %v1452, %v1468
        %v1479 = vunpack.c.l.s4 1934713408
        %v1480 = vunpack.c.0.s8 %v1479
        %v1481 = vlaneseq
        %v1482 = vshrl.u32 %v1481, 7
        %v1483 = vsub.s32 %v1480, %v1482
        %v1484 = vrot.slane %v1476, %v1483
        %v1486 = vunpack.c.l.s4 1934713408
        %v1487 = vunpack.c.0.s8 %v1486
        %v1488 = vlaneseq
        %v1489 = vshrl.u32 %v1488, 7
        %v1490 = vsub.s32 %v1487, %v1489
        %v1491 = vrot.slane %v1477, %v1490
        %v1492 = vcombine.low %v1459, %v1475
        %v1493 = vcombine.high %v1459, %v1475
        %v1495 = vunpack.c.l.s4 1934713408
        %v1496 = vunpack.c.0.s8 %v1495
        %v1497 = vlaneseq
        %v1498 = vshrl.u32 %v1497, 7
        %v1499 = vsub.s32 %v1496, %v1498
        %v1500 = vrot.slane %v1492, %v1499
        %v1502 = vunpack.c.l.s4 1934713408
        %v1503 = vunpack.c.0.s8 %v1502
        %v1504 = vlaneseq
        %v1505 = vshrl.u32 %v1504, 7
        %v1506 = vsub.s32 %v1503, %v1505
        %v1507 = vrot.slane %v1493, %v1506
        %v1508 = vcombine.high %v1484, 0.0
        %v1509 = vcombine.high %v1491, 0.0
        %v1510 = vcombine.high %v1500, 0.0
        %v1511 = vcombine.high %v1507, 0.0
        %v1512 = vcombine.low %v1423, %v1431
        %v1513 = vcombine.high %v1423, %v1431
        %v1515 = vunpack.c.l.s4 1983009808
        %v1516 = vunpack.c.0.s8 %v1515
        %v1517 = vlaneseq
        %v1518 = vshrl.u32 %v1517, 7
        %v1519 = vsub.s32 %v1516, %v1518
        %v1520 = vrot.slane %v1512, %v1519
        %v1522 = vunpack.c.l.s4 1983009808
        %v1523 = vunpack.c.0.s8 %v1522
        %v1524 = vlaneseq
        %v1525 = vshrl.u32 %v1524, 7
        %v1526 = vsub.s32 %v1523, %v1525
        %v1527 = vrot.slane %v1513, %v1526
        %v1528 = vcombine.low %v1427, %v1435
        %v1529 = vcombine.high %v1427, %v1435
        %v1531 = vunpack.c.l.s4 1983009808
        %v1532 = vunpack.c.0.s8 %v1531
        %v1533 = vlaneseq
        %v1534 = vshrl.u32 %v1533, 7
        %v1535 = vsub.s32 %v1532, %v1534
        %v1536 = vrot.slane %v1528, %v1535
        %v1538 = vunpack.c.l.s4 1983009808
        %v1539 = vunpack.c.0.s8 %v1538
        %v1540 = vlaneseq
        %v1541 = vshrl.u32 %v1540, 7
        %v1542 = vsub.s32 %v1539, %v1541
        %v1543 = vrot.slane %v1529, %v1542
        %v1544 = vcombine.low %v1520, %v1536
        %v1545 = vcombine.high %v1520, %v1536
        %v1547 = vunpack.c.l.s4 1934713408
        %v1548 = vunpack.c.0.s8 %v1547
        %v1549 = vlaneseq
        %v1550 = vshrl.u32 %v1549, 7
        %v1551 = vsub.s32 %v1548, %v1550
        %v1552 = vrot.slane %v1544, %v1551
        %v1554 = vunpack.c.l.s4 1934713408
        %v1555 = vunpack.c.0.s8 %v1554
        %v1556 = vlaneseq
        %v1557 = vshrl.u32 %v1556, 7
        %v1558 = vsub.s32 %v1555, %v1557
        %v1559 = vrot.slane %v1545, %v1558
        %v1560 = vcombine.low %v1527, %v1543
        %v1561 = vcombine.high %v1527, %v1543
        %v1563 = vunpack.c.l.s4 1934713408
        %v1564 = vunpack.c.0.s8 %v1563
        %v1565 = vlaneseq
        %v1566 = vshrl.u32 %v1565, 7
        %v1567 = vsub.s32 %v1564, %v1566
        %v1568 = vrot.slane %v1560, %v1567
        %v1570 = vunpack.c.l.s4 1934713408
        %v1571 = vunpack.c.0.s8 %v1570
        %v1572 = vlaneseq
        %v1573 = vshrl.u32 %v1572, 7
        %v1574 = vsub.s32 %v1571, %v1573
        %v1575 = vrot.slane %v1561, %v1574
        %v1576 = vcombine.high %v1552, 0.0
        %v1577 = vcombine.high %v1559, 0.0
        %v1578 = vcombine.high %v1568, 0.0
        %v1579 = vcombine.high %v1575, 0.0
        %1581 = vrot.lane.b32.xlu0 %v1508, 16
        %v1582 = vpop.permute.xlu0 %1581
        %1585 = vrot.lane.b32.xlu0 %v1491, 32
        %v1586 = vpop.permute.xlu0 %1585
        %1589 = vrot.lane.b32.xlu0 %v1509, 48
        %v1590 = vpop.permute.xlu0 %1589
        %1593 = vrot.lane.b32.xlu0 %v1500, 64
        %v1594 = vpop.permute.xlu0 %1593
        %1597 = vrot.lane.b32.xlu0 %v1510, 80
        %v1598 = vpop.permute.xlu0 %1597
        %1601 = vrot.lane.b32.xlu0 %v1507, 96
        %v1602 = vpop.permute.xlu0 %1601
        %1605 = vrot.lane.b32.xlu0 %v1511, 112
        %v1606 = vpop.permute.xlu0 %1605
        %1609 = vrot.lane.b32.xlu0 %v1576, 16
        %v1610 = vpop.permute.xlu0 %1609
        %1613 = vrot.lane.b32.xlu0 %v1559, 32
        %v1614 = vpop.permute.xlu0 %1613
        %1617 = vrot.lane.b32.xlu0 %v1577, 48
        %v1618 = vpop.permute.xlu0 %1617
        %1621 = vrot.lane.b32.xlu0 %v1568, 64
        %v1622 = vpop.permute.xlu0 %1621
        %1625 = vrot.lane.b32.xlu0 %v1578, 80
        %v1626 = vpop.permute.xlu0 %1625
        %1629 = vrot.lane.b32.xlu0 %v1575, 96
        %v1630 = vpop.permute.xlu0 %1629
        %1633 = vrot.lane.b32.xlu0 %v1579, 112
        %v1634 = vpop.permute.xlu0 %1633
        %v1636 = vsel %vm466, %v1484, %v1582
        %v1637 = vsel %vm468, %v1636, %v1586
        %v1638 = vsel %vm470, %v1637, %v1590
        %v1639 = vsel %vm472, %v1638, %v1594
        %v1640 = vsel %vm474, %v1639, %v1598
        %v1641 = vsel %vm476, %v1640, %v1602
        %v1642 = vsel %vm478, %v1641, %v1606
        %v1643 = vsel %vm466, %v1552, %v1610
        %v1644 = vsel %vm468, %v1643, %v1614
        %v1645 = vsel %vm470, %v1644, %v1618
        %v1646 = vsel %vm472, %v1645, %v1622
        %v1647 = vsel %vm474, %v1646, %v1626
        %v1648 = vsel %vm476, %v1647, %v1630
        %v1649 = vsel %vm478, %v1648, %v1634
        %vm1650 = vcmask 1045504
        %v1651 = vrot.slane %v266, 2
        %v1652 = vrot.slane %v244, 2
        %v1653 = vsel %vm1650, %v1651, %v1652
        %v1654 = vrot.slane %v270, 2
        %v1655 = vsel %vm1650, %v1652, %v1654
        %v1656 = vrot.slane %v267, 2
        %v1657 = vrot.slane %v247, 2
        %v1658 = vsel %vm1650, %v1656, %v1657
        %v1659 = vrot.slane %v271, 2
        %v1660 = vsel %vm1650, %v1657, %v1659
        %v1661 = vrot.slane %v268, 2
        %v1662 = vrot.slane %v250, 2
        %v1663 = vsel %vm1650, %v1661, %v1662
        %v1664 = vrot.slane %v272, 2
        %v1665 = vsel %vm1650, %v1662, %v1664
        %v1666 = vrot.slane %v269, 2
        %v1667 = vrot.slane %v253, 2
        %v1668 = vsel %vm1650, %v1666, %v1667
        %v1669 = vrot.slane %v273, 2
        %v1670 = vsel %vm1650, %v1667, %v1669
        %v1679 = vcombine.low %v1653, %v1663
        %v1680 = vcombine.high %v1653, %v1663
        %v1682 = vunpack.c.l.s4 1983009808
        %v1683 = vunpack.c.0.s8 %v1682
        %v1684 = vlaneseq
        %v1685 = vshrl.u32 %v1684, 7
        %v1686 = vsub.s32 %v1683, %v1685
        %v1687 = vrot.slane %v1679, %v1686
        %v1689 = vunpack.c.l.s4 1983009808
        %v1690 = vunpack.c.0.s8 %v1689
        %v1691 = vlaneseq
        %v1692 = vshrl.u32 %v1691, 7
        %v1693 = vsub.s32 %v1690, %v1692
        %v1694 = vrot.slane %v1680, %v1693
        %v1695 = vcombine.low %v1658, %v1668
        %v1696 = vcombine.high %v1658, %v1668
        %v1698 = vunpack.c.l.s4 1983009808
        %v1699 = vunpack.c.0.s8 %v1698
        %v1700 = vlaneseq
        %v1701 = vshrl.u32 %v1700, 7
        %v1702 = vsub.s32 %v1699, %v1701
        %v1703 = vrot.slane %v1695, %v1702
        %v1705 = vunpack.c.l.s4 1983009808
        %v1706 = vunpack.c.0.s8 %v1705
        %v1707 = vlaneseq
        %v1708 = vshrl.u32 %v1707, 7
        %v1709 = vsub.s32 %v1706, %v1708
        %v1710 = vrot.slane %v1696, %v1709
        %v1711 = vcombine.low %v1687, %v1703
        %v1712 = vcombine.high %v1687, %v1703
        %v1714 = vunpack.c.l.s4 1934713408
        %v1715 = vunpack.c.0.s8 %v1714
        %v1716 = vlaneseq
        %v1717 = vshrl.u32 %v1716, 7
        %v1718 = vsub.s32 %v1715, %v1717
        %v1719 = vrot.slane %v1711, %v1718
        %v1721 = vunpack.c.l.s4 1934713408
        %v1722 = vunpack.c.0.s8 %v1721
        %v1723 = vlaneseq
        %v1724 = vshrl.u32 %v1723, 7
        %v1725 = vsub.s32 %v1722, %v1724
        %v1726 = vrot.slane %v1712, %v1725
        %v1727 = vcombine.low %v1694, %v1710
        %v1728 = vcombine.high %v1694, %v1710
        %v1730 = vunpack.c.l.s4 1934713408
        %v1731 = vunpack.c.0.s8 %v1730
        %v1732 = vlaneseq
        %v1733 = vshrl.u32 %v1732, 7
        %v1734 = vsub.s32 %v1731, %v1733
        %v1735 = vrot.slane %v1727, %v1734
        %v1737 = vunpack.c.l.s4 1934713408
        %v1738 = vunpack.c.0.s8 %v1737
        %v1739 = vlaneseq
        %v1740 = vshrl.u32 %v1739, 7
        %v1741 = vsub.s32 %v1738, %v1740
        %v1742 = vrot.slane %v1728, %v1741
        %v1743 = vcombine.high %v1719, 0.0
        %v1744 = vcombine.high %v1726, 0.0
        %v1745 = vcombine.high %v1735, 0.0
        %v1746 = vcombine.high %v1742, 0.0
        %v1747 = vcombine.low %v1655, %v1665
        %v1748 = vcombine.high %v1655, %v1665
        %v1750 = vunpack.c.l.s4 1983009808
        %v1751 = vunpack.c.0.s8 %v1750
        %v1752 = vlaneseq
        %v1753 = vshrl.u32 %v1752, 7
        %v1754 = vsub.s32 %v1751, %v1753
        %v1755 = vrot.slane %v1747, %v1754
        %v1757 = vunpack.c.l.s4 1983009808
        %v1758 = vunpack.c.0.s8 %v1757
        %v1759 = vlaneseq
        %v1760 = vshrl.u32 %v1759, 7
        %v1761 = vsub.s32 %v1758, %v1760
        %v1762 = vrot.slane %v1748, %v1761
        %v1763 = vcombine.low %v1660, %v1670
        %v1764 = vcombine.high %v1660, %v1670
        %v1766 = vunpack.c.l.s4 1983009808
        %v1767 = vunpack.c.0.s8 %v1766
        %v1768 = vlaneseq
        %v1769 = vshrl.u32 %v1768, 7
        %v1770 = vsub.s32 %v1767, %v1769
        %v1771 = vrot.slane %v1763, %v1770
        %v1773 = vunpack.c.l.s4 1983009808
        %v1774 = vunpack.c.0.s8 %v1773
        %v1775 = vlaneseq
        %v1776 = vshrl.u32 %v1775, 7
        %v1777 = vsub.s32 %v1774, %v1776
        %v1778 = vrot.slane %v1764, %v1777
        %v1779 = vcombine.low %v1755, %v1771
        %v1780 = vcombine.high %v1755, %v1771
        %v1782 = vunpack.c.l.s4 1934713408
        %v1783 = vunpack.c.0.s8 %v1782
        %v1784 = vlaneseq
        %v1785 = vshrl.u32 %v1784, 7
        %v1786 = vsub.s32 %v1783, %v1785
        %v1787 = vrot.slane %v1779, %v1786
        %v1789 = vunpack.c.l.s4 1934713408
        %v1790 = vunpack.c.0.s8 %v1789
        %v1791 = vlaneseq
        %v1792 = vshrl.u32 %v1791, 7
        %v1793 = vsub.s32 %v1790, %v1792
        %v1794 = vrot.slane %v1780, %v1793
        %v1795 = vcombine.low %v1762, %v1778
        %v1796 = vcombine.high %v1762, %v1778
        %v1798 = vunpack.c.l.s4 1934713408
        %v1799 = vunpack.c.0.s8 %v1798
        %v1800 = vlaneseq
        %v1801 = vshrl.u32 %v1800, 7
        %v1802 = vsub.s32 %v1799, %v1801
        %v1803 = vrot.slane %v1795, %v1802
        %v1805 = vunpack.c.l.s4 1934713408
        %v1806 = vunpack.c.0.s8 %v1805
        %v1807 = vlaneseq
        %v1808 = vshrl.u32 %v1807, 7
        %v1809 = vsub.s32 %v1806, %v1808
        %v1810 = vrot.slane %v1796, %v1809
        %v1811 = vcombine.high %v1787, 0.0
        %v1812 = vcombine.high %v1794, 0.0
        %v1813 = vcombine.high %v1803, 0.0
        %v1814 = vcombine.high %v1810, 0.0
        %1816 = vrot.lane.b32.xlu0 %v1743, 16
        %v1817 = vpop.permute.xlu0 %1816
        %1820 = vrot.lane.b32.xlu0 %v1726, 32
        %v1821 = vpop.permute.xlu0 %1820
        %1824 = vrot.lane.b32.xlu0 %v1744, 48
        %v1825 = vpop.permute.xlu0 %1824
        %1828 = vrot.lane.b32.xlu0 %v1735, 64
        %v1829 = vpop.permute.xlu0 %1828
        %1832 = vrot.lane.b32.xlu0 %v1745, 80
        %v1833 = vpop.permute.xlu0 %1832
        %1836 = vrot.lane.b32.xlu0 %v1742, 96
        %v1837 = vpop.permute.xlu0 %1836
        %1840 = vrot.lane.b32.xlu0 %v1746, 112
        %v1841 = vpop.permute.xlu0 %1840
        %1844 = vrot.lane.b32.xlu0 %v1811, 16
        %v1845 = vpop.permute.xlu0 %1844
        %1848 = vrot.lane.b32.xlu0 %v1794, 32
        %v1849 = vpop.permute.xlu0 %1848
        %1852 = vrot.lane.b32.xlu0 %v1812, 48
        %v1853 = vpop.permute.xlu0 %1852
        %1856 = vrot.lane.b32.xlu0 %v1803, 64
        %v1857 = vpop.permute.xlu0 %1856
        %1860 = vrot.lane.b32.xlu0 %v1813, 80
        %v1861 = vpop.permute.xlu0 %1860
        %1864 = vrot.lane.b32.xlu0 %v1810, 96
        %v1865 = vpop.permute.xlu0 %1864
        %1868 = vrot.lane.b32.xlu0 %v1814, 112
        %v1869 = vpop.permute.xlu0 %1868
        %v1871 = vsel %vm466, %v1719, %v1817
        %v1872 = vsel %vm468, %v1871, %v1821
        %v1873 = vsel %vm470, %v1872, %v1825
        %v1874 = vsel %vm472, %v1873, %v1829
        %v1875 = vsel %vm474, %v1874, %v1833
        %v1876 = vsel %vm476, %v1875, %v1837
        %v1877 = vsel %vm478, %v1876, %v1841
        %v1878 = vsel %vm466, %v1787, %v1845
        %v1879 = vsel %vm468, %v1878, %v1849
        %v1880 = vsel %vm470, %v1879, %v1853
        %v1881 = vsel %vm472, %v1880, %v1857
        %v1882 = vsel %vm474, %v1881, %v1861
        %v1883 = vsel %vm476, %v1882, %v1865
        %v1884 = vsel %vm478, %v1883, %v1869
        %1885 = vrot.lane.b32.xlu0 %v1653, 127
        %v1886 = vpop.permute.xlu0 %1885
        %1887 = vrot.lane.b32.xlu0 %v1655, 127
        %v1888 = vpop.permute.xlu0 %1887
        %1889 = vrot.lane.b32.xlu0 %v1658, 127
        %v1890 = vpop.permute.xlu0 %1889
        %1891 = vrot.lane.b32.xlu0 %v1660, 127
        %v1892 = vpop.permute.xlu0 %1891
        %1893 = vrot.lane.b32.xlu0 %v1663, 127
        %v1894 = vpop.permute.xlu0 %1893
        %1895 = vrot.lane.b32.xlu0 %v1665, 127
        %v1896 = vpop.permute.xlu0 %1895
        %1897 = vrot.lane.b32.xlu0 %v1668, 127
        %v1898 = vpop.permute.xlu0 %1897
        %1899 = vrot.lane.b32.xlu0 %v1670, 127
        %v1900 = vpop.permute.xlu0 %1899
        %v1909 = vcombine.low %v1886, %v1894
        %v1910 = vcombine.high %v1886, %v1894
        %v1912 = vunpack.c.l.s4 1983009808
        %v1913 = vunpack.c.0.s8 %v1912
        %v1914 = vlaneseq
        %v1915 = vshrl.u32 %v1914, 7
        %v1916 = vsub.s32 %v1913, %v1915
        %v1917 = vrot.slane %v1909, %v1916
        %v1919 = vunpack.c.l.s4 1983009808
        %v1920 = vunpack.c.0.s8 %v1919
        %v1921 = vlaneseq
        %v1922 = vshrl.u32 %v1921, 7
        %v1923 = vsub.s32 %v1920, %v1922
        %v1924 = vrot.slane %v1910, %v1923
        %v1925 = vcombine.low %v1890, %v1898
        %v1926 = vcombine.high %v1890, %v1898
        %v1928 = vunpack.c.l.s4 1983009808
        %v1929 = vunpack.c.0.s8 %v1928
        %v1930 = vlaneseq
        %v1931 = vshrl.u32 %v1930, 7
        %v1932 = vsub.s32 %v1929, %v1931
        %v1933 = vrot.slane %v1925, %v1932
        %v1935 = vunpack.c.l.s4 1983009808
        %v1936 = vunpack.c.0.s8 %v1935
        %v1937 = vlaneseq
        %v1938 = vshrl.u32 %v1937, 7
        %v1939 = vsub.s32 %v1936, %v1938
        %v1940 = vrot.slane %v1926, %v1939
        %v1941 = vcombine.low %v1917, %v1933
        %v1942 = vcombine.high %v1917, %v1933
        %v1944 = vunpack.c.l.s4 1934713408
        %v1945 = vunpack.c.0.s8 %v1944
        %v1946 = vlaneseq
        %v1947 = vshrl.u32 %v1946, 7
        %v1948 = vsub.s32 %v1945, %v1947
        %v1949 = vrot.slane %v1941, %v1948
        %v1951 = vunpack.c.l.s4 1934713408
        %v1952 = vunpack.c.0.s8 %v1951
        %v1953 = vlaneseq
        %v1954 = vshrl.u32 %v1953, 7
        %v1955 = vsub.s32 %v1952, %v1954
        %v1956 = vrot.slane %v1942, %v1955
        %v1957 = vcombine.low %v1924, %v1940
        %v1958 = vcombine.high %v1924, %v1940
        %v1960 = vunpack.c.l.s4 1934713408
        %v1961 = vunpack.c.0.s8 %v1960
        %v1962 = vlaneseq
        %v1963 = vshrl.u32 %v1962, 7
        %v1964 = vsub.s32 %v1961, %v1963
        %v1965 = vrot.slane %v1957, %v1964
        %v1967 = vunpack.c.l.s4 1934713408
        %v1968 = vunpack.c.0.s8 %v1967
        %v1969 = vlaneseq
        %v1970 = vshrl.u32 %v1969, 7
        %v1971 = vsub.s32 %v1968, %v1970
        %v1972 = vrot.slane %v1958, %v1971
        %v1973 = vcombine.high %v1949, 0.0
        %v1974 = vcombine.high %v1956, 0.0
        %v1975 = vcombine.high %v1965, 0.0
        %v1976 = vcombine.high %v1972, 0.0
        %v1977 = vcombine.low %v1888, %v1896
        %v1978 = vcombine.high %v1888, %v1896
        %v1980 = vunpack.c.l.s4 1983009808
        %v1981 = vunpack.c.0.s8 %v1980
        %v1982 = vlaneseq
        %v1983 = vshrl.u32 %v1982, 7
        %v1984 = vsub.s32 %v1981, %v1983
        %v1985 = vrot.slane %v1977, %v1984
        %v1987 = vunpack.c.l.s4 1983009808
        %v1988 = vunpack.c.0.s8 %v1987
        %v1989 = vlaneseq
        %v1990 = vshrl.u32 %v1989, 7
        %v1991 = vsub.s32 %v1988, %v1990
        %v1992 = vrot.slane %v1978, %v1991
        %v1993 = vcombine.low %v1892, %v1900
        %v1994 = vcombine.high %v1892, %v1900
        %v1996 = vunpack.c.l.s4 1983009808
        %v1997 = vunpack.c.0.s8 %v1996
        %v1998 = vlaneseq
        %v1999 = vshrl.u32 %v1998, 7
        %v2000 = vsub.s32 %v1997, %v1999
        %v2001 = vrot.slane %v1993, %v2000
        %v2003 = vunpack.c.l.s4 1983009808
        %v2004 = vunpack.c.0.s8 %v2003
        %v2005 = vlaneseq
        %v2006 = vshrl.u32 %v2005, 7
        %v2007 = vsub.s32 %v2004, %v2006
        %v2008 = vrot.slane %v1994, %v2007
        %v2009 = vcombine.low %v1985, %v2001
        %v2010 = vcombine.high %v1985, %v2001
        %v2012 = vunpack.c.l.s4 1934713408
        %v2013 = vunpack.c.0.s8 %v2012
        %v2014 = vlaneseq
        %v2015 = vshrl.u32 %v2014, 7
        %v2016 = vsub.s32 %v2013, %v2015
        %v2017 = vrot.slane %v2009, %v2016
        %v2019 = vunpack.c.l.s4 1934713408
        %v2020 = vunpack.c.0.s8 %v2019
        %v2021 = vlaneseq
        %v2022 = vshrl.u32 %v2021, 7
        %v2023 = vsub.s32 %v2020, %v2022
        %v2024 = vrot.slane %v2010, %v2023
        %v2025 = vcombine.low %v1992, %v2008
        %v2026 = vcombine.high %v1992, %v2008
        %v2028 = vunpack.c.l.s4 1934713408
        %v2029 = vunpack.c.0.s8 %v2028
        %v2030 = vlaneseq
        %v2031 = vshrl.u32 %v2030, 7
        %v2032 = vsub.s32 %v2029, %v2031
        %v2033 = vrot.slane %v2025, %v2032
        %v2035 = vunpack.c.l.s4 1934713408
        %v2036 = vunpack.c.0.s8 %v2035
        %v2037 = vlaneseq
        %v2038 = vshrl.u32 %v2037, 7
        %v2039 = vsub.s32 %v2036, %v2038
        %v2040 = vrot.slane %v2026, %v2039
        %v2041 = vcombine.high %v2017, 0.0
        %v2042 = vcombine.high %v2024, 0.0
        %v2043 = vcombine.high %v2033, 0.0
        %v2044 = vcombine.high %v2040, 0.0
        %2046 = vrot.lane.b32.xlu0 %v1973, 16
        %v2047 = vpop.permute.xlu0 %2046
        %2050 = vrot.lane.b32.xlu0 %v1956, 32
        %v2051 = vpop.permute.xlu0 %2050
        %2054 = vrot.lane.b32.xlu0 %v1974, 48
        %v2055 = vpop.permute.xlu0 %2054
        %2058 = vrot.lane.b32.xlu0 %v1965, 64
        %v2059 = vpop.permute.xlu0 %2058
        %2062 = vrot.lane.b32.xlu0 %v1975, 80
        %v2063 = vpop.permute.xlu0 %2062
        %2066 = vrot.lane.b32.xlu0 %v1972, 96
        %v2067 = vpop.permute.xlu0 %2066
        %2070 = vrot.lane.b32.xlu0 %v1976, 112
        %v2071 = vpop.permute.xlu0 %2070
        %2074 = vrot.lane.b32.xlu0 %v2041, 16
        %v2075 = vpop.permute.xlu0 %2074
        %2078 = vrot.lane.b32.xlu0 %v2024, 32
        %v2079 = vpop.permute.xlu0 %2078
        %2082 = vrot.lane.b32.xlu0 %v2042, 48
        %v2083 = vpop.permute.xlu0 %2082
        %2086 = vrot.lane.b32.xlu0 %v2033, 64
        %v2087 = vpop.permute.xlu0 %2086
        %2090 = vrot.lane.b32.xlu0 %v2043, 80
        %v2091 = vpop.permute.xlu0 %2090
        %2094 = vrot.lane.b32.xlu0 %v2040, 96
        %v2095 = vpop.permute.xlu0 %2094
        %2098 = vrot.lane.b32.xlu0 %v2044, 112
        %v2099 = vpop.permute.xlu0 %2098
        %v2101 = vsel %vm466, %v1949, %v2047
        %v2102 = vsel %vm468, %v2101, %v2051
        %v2103 = vsel %vm470, %v2102, %v2055
        %v2104 = vsel %vm472, %v2103, %v2059
        %v2105 = vsel %vm474, %v2104, %v2063
        %v2106 = vsel %vm476, %v2105, %v2067
        %v2107 = vsel %vm478, %v2106, %v2071
        %v2108 = vsel %vm466, %v2017, %v2075
        %v2109 = vsel %vm468, %v2108, %v2079
        %v2110 = vsel %vm470, %v2109, %v2083
        %v2111 = vsel %vm472, %v2110, %v2087
        %v2112 = vsel %vm474, %v2111, %v2091
        %v2113 = vsel %vm476, %v2112, %v2095
        %v2114 = vsel %vm478, %v2113, %v2099
        %2115 = vrot.lane.b32.xlu0 %v1653, 126
        %v2116 = vpop.permute.xlu0 %2115
        %2117 = vrot.lane.b32.xlu0 %v1655, 126
        %v2118 = vpop.permute.xlu0 %2117
        %2119 = vrot.lane.b32.xlu0 %v1658, 126
        %v2120 = vpop.permute.xlu0 %2119
        %2121 = vrot.lane.b32.xlu0 %v1660, 126
        %v2122 = vpop.permute.xlu0 %2121
        %2123 = vrot.lane.b32.xlu0 %v1663, 126
        %v2124 = vpop.permute.xlu0 %2123
        %2125 = vrot.lane.b32.xlu0 %v1665, 126
        %v2126 = vpop.permute.xlu0 %2125
        %2127 = vrot.lane.b32.xlu0 %v1668, 126
        %v2128 = vpop.permute.xlu0 %2127
        %2129 = vrot.lane.b32.xlu0 %v1670, 126
        %v2130 = vpop.permute.xlu0 %2129
        %v2139 = vcombine.low %v2116, %v2124
        %v2140 = vcombine.high %v2116, %v2124
        %v2142 = vunpack.c.l.s4 1983009808
        %v2143 = vunpack.c.0.s8 %v2142
        %v2144 = vlaneseq
        %v2145 = vshrl.u32 %v2144, 7
        %v2146 = vsub.s32 %v2143, %v2145
        %v2147 = vrot.slane %v2139, %v2146
        %v2149 = vunpack.c.l.s4 1983009808
        %v2150 = vunpack.c.0.s8 %v2149
        %v2151 = vlaneseq
        %v2152 = vshrl.u32 %v2151, 7
        %v2153 = vsub.s32 %v2150, %v2152
        %v2154 = vrot.slane %v2140, %v2153
        %v2155 = vcombine.low %v2120, %v2128
        %v2156 = vcombine.high %v2120, %v2128
        %v2158 = vunpack.c.l.s4 1983009808
        %v2159 = vunpack.c.0.s8 %v2158
        %v2160 = vlaneseq
        %v2161 = vshrl.u32 %v2160, 7
        %v2162 = vsub.s32 %v2159, %v2161
        %v2163 = vrot.slane %v2155, %v2162
        %v2165 = vunpack.c.l.s4 1983009808
        %v2166 = vunpack.c.0.s8 %v2165
        %v2167 = vlaneseq
        %v2168 = vshrl.u32 %v2167, 7
        %v2169 = vsub.s32 %v2166, %v2168
        %v2170 = vrot.slane %v2156, %v2169
        %v2171 = vcombine.low %v2147, %v2163
        %v2172 = vcombine.high %v2147, %v2163
        %v2174 = vunpack.c.l.s4 1934713408
        %v2175 = vunpack.c.0.s8 %v2174
        %v2176 = vlaneseq
        %v2177 = vshrl.u32 %v2176, 7
        %v2178 = vsub.s32 %v2175, %v2177
        %v2179 = vrot.slane %v2171, %v2178
        %v2181 = vunpack.c.l.s4 1934713408
        %v2182 = vunpack.c.0.s8 %v2181
        %v2183 = vlaneseq
        %v2184 = vshrl.u32 %v2183, 7
        %v2185 = vsub.s32 %v2182, %v2184
        %v2186 = vrot.slane %v2172, %v2185
        %v2187 = vcombine.low %v2154, %v2170
        %v2188 = vcombine.high %v2154, %v2170
        %v2190 = vunpack.c.l.s4 1934713408
        %v2191 = vunpack.c.0.s8 %v2190
        %v2192 = vlaneseq
        %v2193 = vshrl.u32 %v2192, 7
        %v2194 = vsub.s32 %v2191, %v2193
        %v2195 = vrot.slane %v2187, %v2194
        %v2197 = vunpack.c.l.s4 1934713408
        %v2198 = vunpack.c.0.s8 %v2197
        %v2199 = vlaneseq
        %v2200 = vshrl.u32 %v2199, 7
        %v2201 = vsub.s32 %v2198, %v2200
        %v2202 = vrot.slane %v2188, %v2201
        %v2203 = vcombine.high %v2179, 0.0
        %v2204 = vcombine.high %v2186, 0.0
        %v2205 = vcombine.high %v2195, 0.0
        %v2206 = vcombine.high %v2202, 0.0
        %v2207 = vcombine.low %v2118, %v2126
        %v2208 = vcombine.high %v2118, %v2126
        %v2210 = vunpack.c.l.s4 1983009808
        %v2211 = vunpack.c.0.s8 %v2210
        %v2212 = vlaneseq
        %v2213 = vshrl.u32 %v2212, 7
        %v2214 = vsub.s32 %v2211, %v2213
        %v2215 = vrot.slane %v2207, %v2214
        %v2217 = vunpack.c.l.s4 1983009808
        %v2218 = vunpack.c.0.s8 %v2217
        %v2219 = vlaneseq
        %v2220 = vshrl.u32 %v2219, 7
        %v2221 = vsub.s32 %v2218, %v2220
        %v2222 = vrot.slane %v2208, %v2221
        %v2223 = vcombine.low %v2122, %v2130
        %v2224 = vcombine.high %v2122, %v2130
        %v2226 = vunpack.c.l.s4 1983009808
        %v2227 = vunpack.c.0.s8 %v2226
        %v2228 = vlaneseq
        %v2229 = vshrl.u32 %v2228, 7
        %v2230 = vsub.s32 %v2227, %v2229
        %v2231 = vrot.slane %v2223, %v2230
        %v2233 = vunpack.c.l.s4 1983009808
        %v2234 = vunpack.c.0.s8 %v2233
        %v2235 = vlaneseq
        %v2236 = vshrl.u32 %v2235, 7
        %v2237 = vsub.s32 %v2234, %v2236
        %v2238 = vrot.slane %v2224, %v2237
        %v2239 = vcombine.low %v2215, %v2231
        %v2240 = vcombine.high %v2215, %v2231
        %v2242 = vunpack.c.l.s4 1934713408
        %v2243 = vunpack.c.0.s8 %v2242
        %v2244 = vlaneseq
        %v2245 = vshrl.u32 %v2244, 7
        %v2246 = vsub.s32 %v2243, %v2245
        %v2247 = vrot.slane %v2239, %v2246
        %v2249 = vunpack.c.l.s4 1934713408
        %v2250 = vunpack.c.0.s8 %v2249
        %v2251 = vlaneseq
        %v2252 = vshrl.u32 %v2251, 7
        %v2253 = vsub.s32 %v2250, %v2252
        %v2254 = vrot.slane %v2240, %v2253
        %v2255 = vcombine.low %v2222, %v2238
        %v2256 = vcombine.high %v2222, %v2238
        %v2258 = vunpack.c.l.s4 1934713408
        %v2259 = vunpack.c.0.s8 %v2258
        %v2260 = vlaneseq
        %v2261 = vshrl.u32 %v2260, 7
        %v2262 = vsub.s32 %v2259, %v2261
        %v2263 = vrot.slane %v2255, %v2262
        %v2265 = vunpack.c.l.s4 1934713408
        %v2266 = vunpack.c.0.s8 %v2265
        %v2267 = vlaneseq
        %v2268 = vshrl.u32 %v2267, 7
        %v2269 = vsub.s32 %v2266, %v2268
        %v2270 = vrot.slane %v2256, %v2269
        %v2271 = vcombine.high %v2247, 0.0
        %v2272 = vcombine.high %v2254, 0.0
        %v2273 = vcombine.high %v2263, 0.0
        %v2274 = vcombine.high %v2270, 0.0
        %2276 = vrot.lane.b32.xlu0 %v2203, 16
        %v2277 = vpop.permute.xlu0 %2276
        %2280 = vrot.lane.b32.xlu0 %v2186, 32
        %v2281 = vpop.permute.xlu0 %2280
        %2284 = vrot.lane.b32.xlu0 %v2204, 48
        %v2285 = vpop.permute.xlu0 %2284
        %2288 = vrot.lane.b32.xlu0 %v2195, 64
        %v2289 = vpop.permute.xlu0 %2288
        %2292 = vrot.lane.b32.xlu0 %v2205, 80
        %v2293 = vpop.permute.xlu0 %2292
        %2296 = vrot.lane.b32.xlu0 %v2202, 96
        %v2297 = vpop.permute.xlu0 %2296
        %2300 = vrot.lane.b32.xlu0 %v2206, 112
        %v2301 = vpop.permute.xlu0 %2300
        %2304 = vrot.lane.b32.xlu0 %v2271, 16
        %v2305 = vpop.permute.xlu0 %2304
        %2308 = vrot.lane.b32.xlu0 %v2254, 32
        %v2309 = vpop.permute.xlu0 %2308
        %2312 = vrot.lane.b32.xlu0 %v2272, 48
        %v2313 = vpop.permute.xlu0 %2312
        %2316 = vrot.lane.b32.xlu0 %v2263, 64
        %v2317 = vpop.permute.xlu0 %2316
        %2320 = vrot.lane.b32.xlu0 %v2273, 80
        %v2321 = vpop.permute.xlu0 %2320
        %2324 = vrot.lane.b32.xlu0 %v2270, 96
        %v2325 = vpop.permute.xlu0 %2324
        %2328 = vrot.lane.b32.xlu0 %v2274, 112
        %v2329 = vpop.permute.xlu0 %2328
        %v2331 = vsel %vm466, %v2179, %v2277
        %v2332 = vsel %vm468, %v2331, %v2281
        %v2333 = vsel %vm470, %v2332, %v2285
        %v2334 = vsel %vm472, %v2333, %v2289
        %v2335 = vsel %vm474, %v2334, %v2293
        %v2336 = vsel %vm476, %v2335, %v2297
        %v2337 = vsel %vm478, %v2336, %v2301
        %v2338 = vsel %vm466, %v2247, %v2305
        %v2339 = vsel %vm468, %v2338, %v2309
        %v2340 = vsel %vm470, %v2339, %v2313
        %v2341 = vsel %vm472, %v2340, %v2317
        %v2342 = vsel %vm474, %v2341, %v2321
        %v2343 = vsel %vm476, %v2342, %v2325
        %v2344 = vsel %vm478, %v2343, %v2329
        %v2347 = vrot.slane %v713, 4
        %v2348 = vrot.slane %v720, 4
        %v2353 = vrot.slane %v1182, 4
        %v2354 = vrot.slane %v1189, 4
        %v2359 = vrot.slane %v1642, 4
        %v2360 = vrot.slane %v1649, 4
        %v2365 = vrot.slane %v2107, 4
        %v2366 = vrot.slane %v2114, 4
        %vm2369 = vcmask 1043456
        %v2370 = vsel %vm2369, %v479, %v2347
        %v2371 = vsel %vm2369, %v486, %v2348
        %v2372 = vsel %vm2369, %v943, %v2353
        %v2373 = vsel %vm2369, %v950, %v2354
        %v2374 = vsel %vm2369, %v1412, %v2359
        %v2375 = vsel %vm2369, %v1419, %v2360
        %v2376 = vsel %vm2369, %v1877, %v2365
        %v2377 = vsel %vm2369, %v1884, %v2366
        %v2378 = vld [vmem:[#allocation5] sm:$0xff]
        %vm2379 = vcmask 293888
        %v2381 = vsel %vm2379, %v2378, 0
        %v2384 = vsel %vm2369, %v2337, 0
        %v2387 = vsel %vm2369, %v2344, 0
        %2389 = vmatprep.subr.mxu0 %v2371
        %2390 = vmatpush1.msra.mxu0 %v2370
        %2391 = vmatprep.subr.mxu0 %v2373
        %2392 = vmatpush1.msra.mxu0 %v2372
        %2393 = vmatprep.subr.mxu0 %v2375
        %2394 = vmatpush1.msra.mxu0 %v2374
        %2395 = vmatprep.subr.mxu0 %v2377
        %2396 = vmatpush1.msra.mxu0 %v2376
        %2397 = vmatprep.subr.mxu0 %v2387
        %2398 = vmatpush1.msra.mxu0 %v2384
        %2399 = vmatprep.subr.mxu0 0.0
        %2400 = vmatpush1.msra.mxu0 0.0
        %2401 = vmatprep.subr.mxu0 0.0
        %2402 = vmatpush1.msra.mxu0 0.0
        %2403 = vmatprep.subr.mxu0 0.0
        %2404 = vmatpush1.msra.mxu0 0.0
        %2405 = vmatprep.subr.mxu0 0.0
        %2406 = vmatpush1.msra.mxu0 0.0
        %2407 = vmatprep.subr.mxu0 0.0
        %2408 = vmatpush1.msra.mxu0 0.0
        %2409 = vmatprep.subr.mxu0 0.0
        %2410 = vmatpush1.msra.mxu0 0.0
        %2411 = vmatprep.subr.mxu0 0.0
        %2412 = vmatpush1.msra.mxu0 0.0
        %2413 = vmatprep.subr.mxu0 0.0
        %2414 = vmatpush1.msra.mxu0 0.0
        %2415 = vmatprep.subr.mxu0 0.0
        %2416 = vmatpush1.msra.mxu0 0.0
        %2417 = vmatprep.subr.mxu0 0.0
        %2418 = vmatpush1.msra.mxu0 0.0
        %2419 = vmatprep.subr.mxu0 0.0
        %2420 = vmatpush1.msra.mxu0 0.0
        %2421 = vmatprep.subr.mxu0 0.0
        %2422 = vmatpush1.msra.mxu0 0.0
        %2423 = vmatprep.subr.mxu0 0.0
        %2424 = vmatpush1.msra.mxu0 0.0
        %2425 = vmatprep.subr.mxu0 0.0
        %2426 = vmatpush1.msra.mxu0 0.0
        %2427 = vmatprep.subr.mxu0 0.0
        %2428 = vmatpush1.msra.mxu0 0.0
        %2429 = vmatprep.subr.mxu0 0.0
        %2430 = vmatpush1.msra.mxu0 0.0
        %2431 = vmatprep.subr.mxu0 0.0
        %2432 = vmatpush1.msra.mxu0 0.0
        %2433 = vmatprep.subr.mxu0 0.0
        %2434 = vmatpush1.msra.mxu0 0.0
        %2435 = vmatprep.subr.mxu0 0.0
        %2436 = vmatpush1.msra.mxu0 0.0
        %2437 = vmatprep.subr.mxu0 0.0
        %2438 = vmatpush1.msra.mxu0 0.0
        %2439 = vmatprep.subr.mxu0 0.0
        %2440 = vmatpush1.msra.mxu0 0.0
        %2441 = vmatprep.subr.mxu0 0.0
        %2442 = vmatpush1.msra.mxu0 0.0
        %2443 = vmatprep.subr.mxu0 0.0
        %2444 = vmatpush1.msra.mxu0 0.0
        %2445 = vmatprep.subr.mxu0 0.0
        %2446 = vmatpush1.msra.mxu0 0.0
        %2447 = vmatprep.subr.mxu0 0.0
        %2448 = vmatpush1.msra.mxu0 0.0
        %2449 = vmatprep.subr.mxu0 0.0
        %2450 = vmatpush1.msra.mxu0 0.0
        %2451 = vmatprep.subr.mxu0 0.0
        %2452 = vmatpush1.msra.mxu0 0.0
        %2453 = vmatprep.mubr.f32.mxu0 0.0
        %2454 = vmatmul.mubr.f32.gmra.mrb[0].mxu0 %v2381
        %v2455 = vpop.f32.mrb[0].mxu0
        %v2456 = vadd.f32 0.0, %v2455
        %v2457 = vpop.f32.mrb[0].mxu0
        %v2458 = vadd.f32 0.0, %v2457
        %2459 = vdwg.mxu0
        %v2460 = vadd.f32 %v2456, %v2458
        %2461 = vadd.xlane.f32.xlu0 %v2460
        %v2462 = vpop.xlane.xlu0 %2461
        %v2463 = vmul.f32 %v2456, %v2456
        %v2464 = vmul.f32 %v2458, %v2458
        %v2465 = vadd.f32 %v2463, %v2464
        %2466 = vadd.xlane.f32.xlu0 %v2465
        %v2467 = vpop.xlane.xlu0 %2466
        %v2468 = vmul.f32 %v2462, 0.00390625
        %v2469 = vmul.f32 %v2467, 0.00390625
        %v2470 = vmul.f32 %v2468, %v2468
        %v2471 = vsub.f32 %v2469, %v2470
        %v2472 = vsub.f32 %v2456, %v2468
        %v2473 = vsub.f32 %v2458, %v2468
        %v2474 = vadd.f32 %v2471, 1e-05
        %v2475 = vrsqrt.pop %v2474
        %v2476 = vmul.f32 %v2472, %v2475
        %v2477 = vmul.f32 %v2473, %v2475
        %v2478 = vmax.f32 %v2476, 0.0
        %v2479 = vmax.f32 %v2477, 0.0
        %2480 = vst [vmem:[%s174] sm:$0xff] %v2478
        %2481 = vst [vmem:[%s174 + $0x8] sm:$0xff] %v2479
        %s2482 = sand.u32 %s75, 1
        %s2483 = scalar_lea.sflag [#allocation4], %s2482
        %s2484 = sand.u32 %s75, 1
        %s2485 = smul.addr %s2484, 16
        %s2486 = scalar_lea.vmem [#allocation7], %s2485
        // Predicated region
        $region37: #{tpu_custom_call.1} parent=27 // pred_check
          %p2487 = pneg %p85
        $region38: #{tpu_custom_call.1} parent=27 // pred_check_branch
          %2489 = sbr.rel (%p2487) target = $region40
        $region39: #{tpu_custom_call.1} parent=27 // pred_region
          %s2491 = ssub.s32 256, 256
          %2492 = vsyncadd %s2483, %s2491
          %s2493 = smul.addr %s20, 2
          %s2494 = smul.addr %s2493, 128
          %s2495 = scalar_lea.hbm %s2, %s2494
          %s2497 = sshll.u32 %s2486, 4
          %s2498 = int_to_ptr.vmem [resolvable:$true] %s2497
          %2500 = dma.vmem_to_hbm [thread:$0]  %s2498, 256, %s2495, %s2483
        $region40: #{tpu_custom_call.1} parent=27 // pred_fallthru
          _
      $region28: #{tpu_custom_call.1} parent=5 // pred_fallthru
        _
      %p2501 = scmp.le.s32.totalorder 2, %s15
      // Predicated region
      $region41: #{tpu_custom_call.1} parent=5 // pred_check
        %p2502 = pneg %p2501
      $region42: #{tpu_custom_call.1} parent=5 // pred_check_branch
        %2504 = sbr.rel (%p2502) target = $region44
      $region43: #{tpu_custom_call.1} parent=5 // pred_region
        %s2505 = ssub.s32 %s15, 2
        // Predicated region
        $region45: #{tpu_custom_call.1} parent=43 // pred_check
          %p2506 = pneg %p91
        $region46: #{tpu_custom_call.1} parent=43 // pred_check_branch
          %2508 = sbr.rel (%p2506) target = $region48
        $region47: #{tpu_custom_call.1} parent=43 // pred_region
          %s2509 = sand.u32 %s76, 1
          %s2510 = scalar_lea.sflag [#allocation4], %s2509
          %s2511 = sand.u32 %s76, 1
          %s2512 = smul.addr %s2511, 16
          %s2513 = scalar_lea.vmem [#allocation7], %s2512
          %2514 = dma.done %s2510, 256
        $region48: #{tpu_custom_call.1} parent=43 // pred_fallthru
          _
      $region44: #{tpu_custom_call.1} parent=5 // pred_fallthru
        _
    $region6: #{tpu_custom_call.1} parent=1 // loop_footer
      %s19 = sadd.s32 1, %s15
    $region7: #{tpu_custom_call.1} parent=1 // loop_footer_branch
      %14 = sbr.rel target = $region3
    $region8: #{tpu_custom_call.1} parent=1 // loop_exit
      _
    %2515 = vsyncpa [#allocation3], 1
    %s2516 = scalar_lea.sflag [#allocation3], 1
    %2517 = vsyncpa %s2516, 1
    %2518 = vsyncpa [#allocation6], 1
    %2519 = vsyncpa [#allocation4], 1
    %s2520 = scalar_lea.sflag [#allocation4], 1
    %2521 = vsyncpa %s2520, 1

</llo_original>
